<compile_context>
chip_gen: v7x
topology: tpu7x:2x2x1
jax: 0.10.0
libtpu: 0.0.40
codegen_flags: <defaults>
</compile_context>

<pallas_src>
import jax
import jax.numpy as jnp
from jax.experimental import pallas as pl
from jax.experimental.pallas import tpu as pltpu

LANE = 128       # feature dims padded to a multiple of this (lane-dense loads/stores)
ROW_ALIGN = 16   # bf16 packs 16 rows per sublane group; also valid for f32
MiB = 1024 * 1024


def _round_up(x, m):
    return (x + m - 1) // m * m


def _tpu_config():
    """Returns (vmem_limit_bytes, dual_core) with conservative fallbacks."""
    vmem_cap = 64 * MiB                       # safe default (v7x-sized)
    try:
        vmem_cap = int(pltpu.get_tpu_info().vmem_capacity_bytes)
    except Exception:
        pass
    # ~56 MiB on v7x (64 MiB physical), ~100 MiB on v5e/v6e (128 MiB physical)
    vmem_limit = min(vmem_cap - 8 * MiB, 100 * MiB)
    try:
        dual_core = "v7" in jax.devices()[0].device_kind.lower()
    except Exception:
        dual_core = vmem_cap <= 64 * MiB
    return vmem_limit, dual_core


# --------------------------------------------------------------- kernel -----

def mlp_kernel(x_ref,
               w0_ref, b0_ref,
               w1_ref, b1_ref,
               w2_ref, b2_ref,
               wo_ref, bo_ref,
               o_ref):
    """Fused forward pass for one tile of rows.

    x_ref : (tm, in_p)      compute dtype (bf16 or f32)
    wK_ref: (in_k, hid_p)   compute dtype
    bK_ref: (1, hid_p)      f32
    wo_ref: (hid_p, out_p)  compute dtype
    bo_ref: (1, out_p)      f32
    o_ref : (tm, out_p)     out dtype
    Accumulation / bias / ReLU are in f32; matmul inputs stay in compute dtype.
    """
    cdt = w0_ref.dtype
    h = x_ref[...]
    h = jnp.dot(h, w0_ref[...], preferred_element_type=jnp.float32) + b0_ref[...]
    h = jnp.maximum(h, 0.0).astype(cdt)
    h = jnp.dot(h, w1_ref[...], preferred_element_type=jnp.float32) + b1_ref[...]
    h = jnp.maximum(h, 0.0).astype(cdt)
    h = jnp.dot(h, w2_ref[...], preferred_element_type=jnp.float32) + b2_ref[...]
    h = jnp.maximum(h, 0.0).astype(cdt)
    o = jnp.dot(h, wo_ref[...], preferred_element_type=jnp.float32) + bo_ref[...]
    o_ref[...] = o.astype(o_ref.dtype)


# -------------------------------------------------------------- wrapper -----

def prepare_params(params, compute_dtype=jnp.bfloat16):
    """Pad/cast weights ONCE (hoisted out of the per-call path).

    params: 4 pairs (W[in, out], b[1, out]) in f32, layers in order
            (hidden0, hidden1, hidden2, output).
    """
    assert len(params) == 4, "kernel is specialized to num_layers=3 + output layer"
    (w0, b0), (w1, b1), (w2, b2), (wo, bo) = params
    input_dim, hidden_dim = w0.shape
    output_dim = wo.shape[1]
    in_p = _round_up(input_dim, LANE)
    hid_p = _round_up(hidden_dim, LANE)
    out_p = _round_up(output_dim, LANE)

    def pad2(a, rows, cols, dtype):
        a = a.astype(dtype)
        return jnp.pad(a, ((0, rows - a.shape[0]), (0, cols - a.shape[1])))

    padded = (
        pad2(w0, in_p, hid_p, compute_dtype),  pad2(b0, 1, hid_p, jnp.float32),
        pad2(w1, hid_p, hid_p, compute_dtype), pad2(b1, 1, hid_p, jnp.float32),
        pad2(w2, hid_p, hid_p, compute_dtype), pad2(b2, 1, hid_p, jnp.float32),
        pad2(wo, hid_p, out_p, compute_dtype), pad2(bo, 1, out_p, jnp.float32),
    )
    dims = dict(input_dim=input_dim, hidden_dim=hidden_dim, output_dim=output_dim,
                in_p=in_p, hid_p=hid_p, out_p=out_p, compute_dtype=compute_dtype)
    return padded, dims


def _choose_tm(N, dual_core, hid_p):
    """Row-tile heuristic (per perf review)."""
    tm_cap = 512
    if dual_core and hid_p >= 2048:
        tm_cap = 256          # keep tm x hid_p live temps small on 64 MiB VMEM
    if dual_core:
        # >= 2 steps and an even step count so both TensorCores stay busy.
        target_grid = max(2, 2 * pl.cdiv(N, 2 * tm_cap))
        return _round_up(pl.cdiv(N, target_grid), ROW_ALIGN)
    # single TensorCore: grid is a serial loop -> one step when it fits.
    return min(tm_cap, _round_up(N, ROW_ALIGN))


def mlp_forward(x, prepared, *, out_dtype=None, tm=None):
    """x: (N, input_dim) f32. prepared: output of prepare_params."""
    padded, dims = prepared
    N, input_dim = x.shape
    assert input_dim == dims["input_dim"]
    cdt = dims["compute_dtype"]
    in_p, out_p, hid_p = dims["in_p"], dims["out_p"], dims["hid_p"]
    if out_dtype is None:
        out_dtype = x.dtype

    vmem_limit, dual_core = _tpu_config()
    if tm is None:
        tm = _choose_tm(N, dual_core, hid_p)
    n_pad = _round_up(N, tm)

    # Only x is padded per call (single cheap jnp.pad); weights were pre-padded.
    x_p = jnp.pad(x.astype(cdt), ((0, n_pad - N), (0, in_p - input_dim)))

    # TODO(synk): for hid_p >= ~4096 in bf16 on v7x the resident weights alone
    # exceed the 64 MiB VMEM; stream per-layer weight column blocks with
    # pltpu.emit_pipeline instead of keeping all four matrices fully resident.

    def run(single_buffer_weights):
        if single_buffer_weights:
            # Grid-invariant blocks: DMA'd once -> one VMEM buffer is enough.
            full = lambda arr: pl.BlockSpec(arr.shape, lambda i: (0, 0),
                                            pipeline_mode=pl.Buffered(1))
        else:
            full = lambda arr: pl.BlockSpec(arr.shape, lambda i: (0, 0))
        return pl.pallas_call(
            mlp_kernel,
            out_shape=jax.ShapeDtypeStruct((n_pad, out_p), out_dtype),
            grid_spec=pltpu.PrefetchScalarGridSpec(
                num_scalar_prefetch=0,
                grid=(n_pad // tm,),
                in_specs=[pl.BlockSpec((tm, in_p), lambda i: (i, 0))]   # x row tile
                         + [full(a) for a in padded],                   # weights/biases
                out_specs=pl.BlockSpec((tm, out_p), lambda i: (i, 0)),
            ),
            compiler_params=pltpu.CompilerParams(
                dimension_semantics=("parallel",),
                vmem_limit_bytes=int(vmem_limit),
            ),
        )(x_p, *padded)

    try:
        out_padded = run(single_buffer_weights=True)
    except Exception:
        # pl.Buffered(1) unsupported on this jax version -> default buffering.
        out_padded = run(single_buffer_weights=False)

    return out_padded[:N, :dims["output_dim"]]


# ----------------------------------------------------- init / reference -----

def init_params(key, input_dim, hidden_dim, output_dim, num_layers=3):
    """Mimics torch.nn.Linear init (uniform +-1/sqrt(fan_in)); W stored [in, out]."""
    sizes = []
    for i in range(num_layers):
        in_f = input_dim if i == 0 else hidden_dim
        sizes.append((in_f, hidden_dim))
    sizes.append((hidden_dim, output_dim))

    params = []
    for (in_f, out_f) in sizes:
        key, kw, kb = jax.random.split(key, 3)
        bound = 1.0 / jnp.sqrt(in_f)
        w = jax.random.uniform(kw, (in_f, out_f), jnp.float32, -bound, bound)
        b = jax.random.uniform(kb, (1, out_f), jnp.float32, -bound, bound)
        params.append((w, b))
    return params


def mlp_reference(x, params):
    h = x
    for i, (w, b) in enumerate(params):
        h = h @ w + b
        if i < len(params) - 1:
            h = jnp.maximum(h, 0.0)
    return h


if __name__ == "__main__":
    key = jax.random.PRNGKey(0)
    input_dim, hidden_dim, output_dim, num_layers = 4, 32, 4, 3
    N = 256  # batch rows

    key, kx = jax.random.split(key)
    x = jax.random.normal(kx, (N, input_dim), jnp.float32)
    params = init_params(key, input_dim, hidden_dim, output_dim, num_layers)

    ref = mlp_reference(x, params)

    # f32 compute path (exact zero padding -> tight tolerance), f32 output.
    prep_f32 = prepare_params(params, compute_dtype=jnp.float32)
    out_f32 = jax.block_until_ready(mlp_forward(x, prep_f32))
    assert out_f32.shape == (N, output_dim)
    assert jnp.allclose(out_f32, ref, atol=1e-4, rtol=1e-4), "f32 kernel mismatch"

    # bf16 compute path (recommended on all generations), bf16 output stores.
    prep_bf16 = prepare_params(params, compute_dtype=jnp.bfloat16)
    out_bf16 = jax.block_until_ready(
        mlp_forward(x, prep_bf16, out_dtype=jnp.bfloat16))
    assert out_bf16.shape == (N, output_dim)
    assert jnp.allclose(out_bf16.astype(jnp.float32), ref,
                        atol=5e-2, rtol=5e-2), "bf16 kernel mismatch"

    print("KERNEL_OK")
</pallas_src>

<mosaic_0001>
module attributes {stable_mosaic.version = 11 : i64} {
  func.func @mlp_kernel(%arg0: i32, %arg1: memref<256x128xf32, #tpu.memory_space<vmem>>, %arg2: memref<128x128xf32, #tpu.memory_space<vmem>>, %arg3: memref<1x128xf32, #tpu.memory_space<vmem>>, %arg4: memref<128x128xf32, #tpu.memory_space<vmem>>, %arg5: memref<1x128xf32, #tpu.memory_space<vmem>>, %arg6: memref<128x128xf32, #tpu.memory_space<vmem>>, %arg7: memref<1x128xf32, #tpu.memory_space<vmem>>, %arg8: memref<128x128xf32, #tpu.memory_space<vmem>>, %arg9: memref<1x128xf32, #tpu.memory_space<vmem>>, %arg10: memref<256x128xf32, #tpu.memory_space<vmem>>) attributes {dimension_semantics = [#tpu.dimension_semantics<parallel>], iteration_bounds = array<i64: 1>, scalar_prefetch = 0 : i64, scratch_operands = 0 : i64, tpu.core_type = #tpu.core_type<tc>, window_params = [{transform_indices = @transform_0, window_bounds = array<i64: 256, 128>}, {pipeline_mode = #tpu.pipeline_mode<synchronous>, transform_indices = @transform_1, window_bounds = array<i64: 128, 128>}, {pipeline_mode = #tpu.pipeline_mode<synchronous>, transform_indices = @transform_2, window_bounds = array<i64: 1, 128>}, {pipeline_mode = #tpu.pipeline_mode<synchronous>, transform_indices = @transform_3, window_bounds = array<i64: 128, 128>}, {pipeline_mode = #tpu.pipeline_mode<synchronous>, transform_indices = @transform_4, window_bounds = array<i64: 1, 128>}, {pipeline_mode = #tpu.pipeline_mode<synchronous>, transform_indices = @transform_5, window_bounds = array<i64: 128, 128>}, {pipeline_mode = #tpu.pipeline_mode<synchronous>, transform_indices = @transform_6, window_bounds = array<i64: 1, 128>}, {pipeline_mode = #tpu.pipeline_mode<synchronous>, transform_indices = @transform_7, window_bounds = array<i64: 128, 128>}, {pipeline_mode = #tpu.pipeline_mode<synchronous>, transform_indices = @transform_8, window_bounds = array<i64: 1, 128>}, {transform_indices = @transform_9, window_bounds = array<i64: 256, 128>}]} {
    %c0 = arith.constant 0 : index
    %c0_0 = arith.constant 0 : index
    %0 = vector.load %arg1[%c0, %c0_0] : memref<256x128xf32, #tpu.memory_space<vmem>>, vector<256x128xf32>
    %c0_1 = arith.constant 0 : index
    %c0_2 = arith.constant 0 : index
    %1 = vector.load %arg2[%c0_1, %c0_2] : memref<128x128xf32, #tpu.memory_space<vmem>>, vector<128x128xf32>
    %cst = arith.constant dense<0.000000e+00> : vector<256x128xf32>
    %2 = tpu.matmul %0, %1, %cst {dimension_numbers = #tpu.dot_dimension_numbers<[1], [0], [0], [1], [0, 0, 1, 1], [], []>} : vector<256x128xf32>, vector<128x128xf32>, vector<256x128xf32> -> vector<256x128xf32>
    %c0_3 = arith.constant 0 : index
    %c0_4 = arith.constant 0 : index
    %3 = vector.load %arg3[%c0_3, %c0_4] : memref<1x128xf32, #tpu.memory_space<vmem>>, vector<1x128xf32>
    %4 = vector.broadcast %3 : vector<1x128xf32> to vector<256x128xf32>
    %5 = arith.addf %2, %4 : vector<256x128xf32>
    %cst_5 = arith.constant 0.000000e+00 : f32
    %6 = vector.broadcast %cst_5 : f32 to vector<256x128xf32>
    %7 = arith.maximumf %5, %6 : vector<256x128xf32>
    %c0_6 = arith.constant 0 : index
    %c0_7 = arith.constant 0 : index
    %8 = vector.load %arg4[%c0_6, %c0_7] : memref<128x128xf32, #tpu.memory_space<vmem>>, vector<128x128xf32>
    %cst_8 = arith.constant dense<0.000000e+00> : vector<256x128xf32>
    %9 = tpu.matmul %7, %8, %cst_8 {dimension_numbers = #tpu.dot_dimension_numbers<[1], [0], [0], [1], [0, 0, 1, 1], [], []>} : vector<256x128xf32>, vector<128x128xf32>, vector<256x128xf32> -> vector<256x128xf32>
    %c0_9 = arith.constant 0 : index
    %c0_10 = arith.constant 0 : index
    %10 = vector.load %arg5[%c0_9, %c0_10] : memref<1x128xf32, #tpu.memory_space<vmem>>, vector<1x128xf32>
    %11 = vector.broadcast %10 : vector<1x128xf32> to vector<256x128xf32>
    %12 = arith.addf %9, %11 : vector<256x128xf32>
    %cst_11 = arith.constant 0.000000e+00 : f32
    %13 = vector.broadcast %cst_11 : f32 to vector<256x128xf32>
    %14 = arith.maximumf %12, %13 : vector<256x128xf32>
    %c0_12 = arith.constant 0 : index
    %c0_13 = arith.constant 0 : index
    %15 = vector.load %arg6[%c0_12, %c0_13] : memref<128x128xf32, #tpu.memory_space<vmem>>, vector<128x128xf32>
    %cst_14 = arith.constant dense<0.000000e+00> : vector<256x128xf32>
    %16 = tpu.matmul %14, %15, %cst_14 {dimension_numbers = #tpu.dot_dimension_numbers<[1], [0], [0], [1], [0, 0, 1, 1], [], []>} : vector<256x128xf32>, vector<128x128xf32>, vector<256x128xf32> -> vector<256x128xf32>
    %c0_15 = arith.constant 0 : index
    %c0_16 = arith.constant 0 : index
    %17 = vector.load %arg7[%c0_15, %c0_16] : memref<1x128xf32, #tpu.memory_space<vmem>>, vector<1x128xf32>
    %18 = vector.broadcast %17 : vector<1x128xf32> to vector<256x128xf32>
    %19 = arith.addf %16, %18 : vector<256x128xf32>
    %cst_17 = arith.constant 0.000000e+00 : f32
    %20 = vector.broadcast %cst_17 : f32 to vector<256x128xf32>
    %21 = arith.maximumf %19, %20 : vector<256x128xf32>
    %c0_18 = arith.constant 0 : index
    %c0_19 = arith.constant 0 : index
    %22 = vector.load %arg8[%c0_18, %c0_19] : memref<128x128xf32, #tpu.memory_space<vmem>>, vector<128x128xf32>
    %cst_20 = arith.constant dense<0.000000e+00> : vector<256x128xf32>
    %23 = tpu.matmul %21, %22, %cst_20 {dimension_numbers = #tpu.dot_dimension_numbers<[1], [0], [0], [1], [0, 0, 1, 1], [], []>} : vector<256x128xf32>, vector<128x128xf32>, vector<256x128xf32> -> vector<256x128xf32>
    %c0_21 = arith.constant 0 : index
    %c0_22 = arith.constant 0 : index
    %24 = vector.load %arg9[%c0_21, %c0_22] : memref<1x128xf32, #tpu.memory_space<vmem>>, vector<1x128xf32>
    %25 = vector.broadcast %24 : vector<1x128xf32> to vector<256x128xf32>
    %26 = arith.addf %23, %25 : vector<256x128xf32>
    %c0_23 = arith.constant 0 : index
    %c0_24 = arith.constant 0 : index
    %27 = vector.load %arg10[%c0_23, %c0_24] : memref<256x128xf32, #tpu.memory_space<vmem>>, vector<256x128xf32>
    tpu.vector_store %arg10[%c0_23, %c0_24], %26 {strides = array<i32>} : memref<256x128xf32, #tpu.memory_space<vmem>>, vector<256x128xf32>,
    return
  }
  func.func @transform_0(%arg0: i32) -> (i32, i32) {
    %c0_i32 = arith.constant 0 : i32
    %c0_i32_0 = arith.constant 0 : i32
    return %arg0, %c0_i32 : i32, i32
  }
  func.func @transform_1(%arg0: i32) -> (i32, i32) {
    %c0_i32 = arith.constant 0 : i32
    %c0_i32_0 = arith.constant 0 : i32
    %c0_i32_1 = arith.constant 0 : i32
    return %c0_i32, %c0_i32_0 : i32, i32
  }
  func.func @transform_2(%arg0: i32) -> (i32, i32) {
    %c0_i32 = arith.constant 0 : i32
    %c0_i32_0 = arith.constant 0 : i32
    %c0_i32_1 = arith.constant 0 : i32
    return %c0_i32, %c0_i32_0 : i32, i32
  }
  func.func @transform_3(%arg0: i32) -> (i32, i32) {
    %c0_i32 = arith.constant 0 : i32
    %c0_i32_0 = arith.constant 0 : i32
    %c0_i32_1 = arith.constant 0 : i32
    return %c0_i32, %c0_i32_0 : i32, i32
  }
  func.func @transform_4(%arg0: i32) -> (i32, i32) {
    %c0_i32 = arith.constant 0 : i32
    %c0_i32_0 = arith.constant 0 : i32
    %c0_i32_1 = arith.constant 0 : i32
    return %c0_i32, %c0_i32_0 : i32, i32
  }
  func.func @transform_5(%arg0: i32) -> (i32, i32) {
    %c0_i32 = arith.constant 0 : i32
    %c0_i32_0 = arith.constant 0 : i32
    %c0_i32_1 = arith.constant 0 : i32
    return %c0_i32, %c0_i32_0 : i32, i32
  }
  func.func @transform_6(%arg0: i32) -> (i32, i32) {
    %c0_i32 = arith.constant 0 : i32
    %c0_i32_0 = arith.constant 0 : i32
    %c0_i32_1 = arith.constant 0 : i32
    return %c0_i32, %c0_i32_0 : i32, i32
  }
  func.func @transform_7(%arg0: i32) -> (i32, i32) {
    %c0_i32 = arith.constant 0 : i32
    %c0_i32_0 = arith.constant 0 : i32
    %c0_i32_1 = arith.constant 0 : i32
    return %c0_i32, %c0_i32_0 : i32, i32
  }
  func.func @transform_8(%arg0: i32) -> (i32, i32) {
    %c0_i32 = arith.constant 0 : i32
    %c0_i32_0 = arith.constant 0 : i32
    %c0_i32_1 = arith.constant 0 : i32
    return %c0_i32, %c0_i32_0 : i32, i32
  }
  func.func @transform_9(%arg0: i32) -> (i32, i32) {
    %c0_i32 = arith.constant 0 : i32
    %c0_i32_0 = arith.constant 0 : i32
    return %arg0, %c0_i32 : i32, i32
  }
}

module attributes {stable_mosaic.version = 11 : i64} {
  func.func @mlp_kernel(%arg0: i32, %arg1: memref<256x128xf32, #tpu.memory_space<vmem>>, %arg2: memref<128x128xf32, #tpu.memory_space<vmem>>, %arg3: memref<1x128xf32, #tpu.memory_space<vmem>>, %arg4: memref<128x128xf32, #tpu.memory_space<vmem>>, %arg5: memref<1x128xf32, #tpu.memory_space<vmem>>, %arg6: memref<128x128xf32, #tpu.memory_space<vmem>>, %arg7: memref<1x128xf32, #tpu.memory_space<vmem>>, %arg8: memref<128x128xf32, #tpu.memory_space<vmem>>, %arg9: memref<1x128xf32, #tpu.memory_space<vmem>>, %arg10: memref<256x128xf32, #tpu.memory_space<vmem>>) attributes {dimension_semantics = [#tpu.dimension_semantics<parallel>], iteration_bounds = array<i64: 1>, scalar_prefetch = 0 : i64, scratch_operands = 0 : i64, tpu.core_type = #tpu.core_type<tc>, window_params = [{transform_indices = @transform_0, window_bounds = array<i64: 256, 128>}, {pipeline_mode = #tpu.pipeline_mode<synchronous>, transform_indices = @transform_1, window_bounds = array<i64: 128, 128>}, {pipeline_mode = #tpu.pipeline_mode<synchronous>, transform_indices = @transform_2, window_bounds = array<i64: 1, 128>}, {pipeline_mode = #tpu.pipeline_mode<synchronous>, transform_indices = @transform_3, window_bounds = array<i64: 128, 128>}, {pipeline_mode = #tpu.pipeline_mode<synchronous>, transform_indices = @transform_4, window_bounds = array<i64: 1, 128>}, {pipeline_mode = #tpu.pipeline_mode<synchronous>, transform_indices = @transform_5, window_bounds = array<i64: 128, 128>}, {pipeline_mode = #tpu.pipeline_mode<synchronous>, transform_indices = @transform_6, window_bounds = array<i64: 1, 128>}, {pipeline_mode = #tpu.pipeline_mode<synchronous>, transform_indices = @transform_7, window_bounds = array<i64: 128, 128>}, {pipeline_mode = #tpu.pipeline_mode<synchronous>, transform_indices = @transform_8, window_bounds = array<i64: 1, 128>}, {transform_indices = @transform_9, window_bounds = array<i64: 256, 128>}]} {
    %c0 = arith.constant 0 : index
    %c0_0 = arith.constant 0 : index
    %0 = vector.load %arg1[%c0, %c0_0] : memref<256x128xf32, #tpu.memory_space<vmem>>, vector<256x128xf32>
    %c0_1 = arith.constant 0 : index
    %c0_2 = arith.constant 0 : index
    %1 = vector.load %arg2[%c0_1, %c0_2] : memref<128x128xf32, #tpu.memory_space<vmem>>, vector<128x128xf32>
    %cst = arith.constant dense<0.000000e+00> : vector<256x128xf32>
    %2 = tpu.matmul %0, %1, %cst {dimension_numbers = #tpu.dot_dimension_numbers<[1], [0], [0], [1], [0, 0, 1, 1], [], []>} : vector<256x128xf32>, vector<128x128xf32>, vector<256x128xf32> -> vector<256x128xf32>
    %c0_3 = arith.constant 0 : index
    %c0_4 = arith.constant 0 : index
    %3 = vector.load %arg3[%c0_3, %c0_4] : memref<1x128xf32, #tpu.memory_space<vmem>>, vector<1x128xf32>
    %4 = vector.broadcast %3 : vector<1x128xf32> to vector<256x128xf32>
    %5 = arith.addf %2, %4 : vector<256x128xf32>
    %cst_5 = arith.constant 0.000000e+00 : f32
    %6 = vector.broadcast %cst_5 : f32 to vector<256x128xf32>
    %7 = arith.maximumf %5, %6 : vector<256x128xf32>
    %c0_6 = arith.constant 0 : index
    %c0_7 = arith.constant 0 : index
    %8 = vector.load %arg4[%c0_6, %c0_7] : memref<128x128xf32, #tpu.memory_space<vmem>>, vector<128x128xf32>
    %cst_8 = arith.constant dense<0.000000e+00> : vector<256x128xf32>
    %9 = tpu.matmul %7, %8, %cst_8 {dimension_numbers = #tpu.dot_dimension_numbers<[1], [0], [0], [1], [0, 0, 1, 1], [], []>} : vector<256x128xf32>, vector<128x128xf32>, vector<256x128xf32> -> vector<256x128xf32>
    %c0_9 = arith.constant 0 : index
    %c0_10 = arith.constant 0 : index
    %10 = vector.load %arg5[%c0_9, %c0_10] : memref<1x128xf32, #tpu.memory_space<vmem>>, vector<1x128xf32>
    %11 = vector.broadcast %10 : vector<1x128xf32> to vector<256x128xf32>
    %12 = arith.addf %9, %11 : vector<256x128xf32>
    %cst_11 = arith.constant 0.000000e+00 : f32
    %13 = vector.broadcast %cst_11 : f32 to vector<256x128xf32>
    %14 = arith.maximumf %12, %13 : vector<256x128xf32>
    %c0_12 = arith.constant 0 : index
    %c0_13 = arith.constant 0 : index
    %15 = vector.load %arg6[%c0_12, %c0_13] : memref<128x128xf32, #tpu.memory_space<vmem>>, vector<128x128xf32>
    %cst_14 = arith.constant dense<0.000000e+00> : vector<256x128xf32>
    %16 = tpu.matmul %14, %15, %cst_14 {dimension_numbers = #tpu.dot_dimension_numbers<[1], [0], [0], [1], [0, 0, 1, 1], [], []>} : vector<256x128xf32>, vector<128x128xf32>, vector<256x128xf32> -> vector<256x128xf32>
    %c0_15 = arith.constant 0 : index
    %c0_16 = arith.constant 0 : index
    %17 = vector.load %arg7[%c0_15, %c0_16] : memref<1x128xf32, #tpu.memory_space<vmem>>, vector<1x128xf32>
    %18 = vector.broadcast %17 : vector<1x128xf32> to vector<256x128xf32>
    %19 = arith.addf %16, %18 : vector<256x128xf32>
    %cst_17 = arith.constant 0.000000e+00 : f32
    %20 = vector.broadcast %cst_17 : f32 to vector<256x128xf32>
    %21 = arith.maximumf %19, %20 : vector<256x128xf32>
    %c0_18 = arith.constant 0 : index
    %c0_19 = arith.constant 0 : index
    %22 = vector.load %arg8[%c0_18, %c0_19] : memref<128x128xf32, #tpu.memory_space<vmem>>, vector<128x128xf32>
    %cst_20 = arith.constant dense<0.000000e+00> : vector<256x128xf32>
    %23 = tpu.matmul %21, %22, %cst_20 {dimension_numbers = #tpu.dot_dimension_numbers<[1], [0], [0], [1], [0, 0, 1, 1], [], []>} : vector<256x128xf32>, vector<128x128xf32>, vector<256x128xf32> -> vector<256x128xf32>
    %c0_21 = arith.constant 0 : index
    %c0_22 = arith.constant 0 : index
    %24 = vector.load %arg9[%c0_21, %c0_22] : memref<1x128xf32, #tpu.memory_space<vmem>>, vector<1x128xf32>
    %25 = vector.broadcast %24 : vector<1x128xf32> to vector<256x128xf32>
    %26 = arith.addf %23, %25 : vector<256x128xf32>
    %c0_23 = arith.constant 0 : index
    %c0_24 = arith.constant 0 : index
    %27 = vector.load %arg10[%c0_23, %c0_24] : memref<256x128xf32, #tpu.memory_space<vmem>>, vector<256x128xf32>
    tpu.vector_store %arg10[%c0_23, %c0_24], %26 {strides = array<i32>} : memref<256x128xf32, #tpu.memory_space<vmem>>, vector<256x128xf32>,
    return
  }
  func.func @transform_0(%arg0: i32) -> (i32, i32) {
    %c0_i32 = arith.constant 0 : i32
    %c0_i32_0 = arith.constant 0 : i32
    return %arg0, %c0_i32 : i32, i32
  }
  func.func @transform_1(%arg0: i32) -> (i32, i32) {
    %c0_i32 = arith.constant 0 : i32
    %c0_i32_0 = arith.constant 0 : i32
    %c0_i32_1 = arith.constant 0 : i32
    return %c0_i32, %c0_i32_0 : i32, i32
  }
  func.func @transform_2(%arg0: i32) -> (i32, i32) {
    %c0_i32 = arith.constant 0 : i32
    %c0_i32_0 = arith.constant 0 : i32
    %c0_i32_1 = arith.constant 0 : i32
    return %c0_i32, %c0_i32_0 : i32, i32
  }
  func.func @transform_3(%arg0: i32) -> (i32, i32) {
    %c0_i32 = arith.constant 0 : i32
    %c0_i32_0 = arith.constant 0 : i32
    %c0_i32_1 = arith.constant 0 : i32
    return %c0_i32, %c0_i32_0 : i32, i32
  }
  func.func @transform_4(%arg0: i32) -> (i32, i32) {
    %c0_i32 = arith.constant 0 : i32
    %c0_i32_0 = arith.constant 0 : i32
    %c0_i32_1 = arith.constant 0 : i32
    return %c0_i32, %c0_i32_0 : i32, i32
  }
  func.func @transform_5(%arg0: i32) -> (i32, i32) {
    %c0_i32 = arith.constant 0 : i32
    %c0_i32_0 = arith.constant 0 : i32
    %c0_i32_1 = arith.constant 0 : i32
    return %c0_i32, %c0_i32_0 : i32, i32
  }
  func.func @transform_6(%arg0: i32) -> (i32, i32) {
    %c0_i32 = arith.constant 0 : i32
    %c0_i32_0 = arith.constant 0 : i32
    %c0_i32_1 = arith.constant 0 : i32
    return %c0_i32, %c0_i32_0 : i32, i32
  }
  func.func @transform_7(%arg0: i32) -> (i32, i32) {
    %c0_i32 = arith.constant 0 : i32
    %c0_i32_0 = arith.constant 0 : i32
    %c0_i32_1 = arith.constant 0 : i32
    return %c0_i32, %c0_i32_0 : i32, i32
  }
  func.func @transform_8(%arg0: i32) -> (i32, i32) {
    %c0_i32 = arith.constant 0 : i32
    %c0_i32_0 = arith.constant 0 : i32
    %c0_i32_1 = arith.constant 0 : i32
    return %c0_i32, %c0_i32_0 : i32, i32
  }
  func.func @transform_9(%arg0: i32) -> (i32, i32) {
    %c0_i32 = arith.constant 0 : i32
    %c0_i32_0 = arith.constant 0 : i32
    return %arg0, %c0_i32 : i32, i32
  }
}

</mosaic_0001>

<llo_original>
// kernel: tpu_custom_call.1
$region0: #{tpu_custom_call.1}
  #allocation0 [shape = 'u32[]', space=smem, size = 0x4, offset = 0x4, fixed_abs, tag = 'smem constant byte address 0x4 - core index']
  #allocation1 [shape = 'u32[144,128]{1,0:T(1,128)}', space=vmem, size = 0x12000, scoped, tag = 'internal scratch']
  %s0 = inlined_call_operand.hbm [shape: f32[256,128], index: 0, kind: input, shape index: {}]
  %s1 = inlined_call_operand.hbm [shape: f32[128,128], index: 1, kind: input, shape index: {}]
  %s2 = inlined_call_operand.vmem [shape: f32[1,128], index: 2, kind: input, shape index: {}]
  %s3 = inlined_call_operand.hbm [shape: f32[128,128], index: 3, kind: input, shape index: {}]
  %s4 = inlined_call_operand.vmem [shape: f32[1,128], index: 4, kind: input, shape index: {}]
  %s5 = inlined_call_operand.hbm [shape: f32[128,128], index: 5, kind: input, shape index: {}]
  %s6 = inlined_call_operand.vmem [shape: f32[1,128], index: 6, kind: input, shape index: {}]
  %s7 = inlined_call_operand.hbm [shape: f32[128,128], index: 7, kind: input, shape index: {}]
  %s8 = inlined_call_operand.vmem [shape: f32[1,128], index: 8, kind: input, shape index: {}]
  %s9 = inlined_call_operand.hbm [shape: f32[256,128], index: 9, kind: output, shape index: {}]
  %s10 = sld [smem:[#allocation0]]
  $region66: #{tpu_custom_call.1} parent=0
    _
  %s12 = ssub.s32 1, %s10
  %s13 = scalar_select 0, %s12, %s10
  $region1: #{tpu_custom_call.1} parent=0
    #allocation2 [shape = 'u8[131072]{0}', space=vmem, size = 0x20000, scoped, tag = 'input window, operand 0, single buffered']
    #allocation3 [shape = 's32[1]{0}', space=sflag, size = 0x4, scoped, tag = 'scoped memory for tpu_custom_call.1']
    #allocation4 [shape = 's32[1]{0}', space=sflag, size = 0x4, scoped, tag = 'scoped memory for tpu_custom_call.1']
    #allocation5 [shape = 'u8[65536]{0}', space=vmem, size = 0x10000, scoped, tag = 'input window, operand 1, single buffered']
    #allocation6 [shape = 's32[1]{0}', space=sflag, size = 0x4, scoped, tag = 'scoped memory for tpu_custom_call.1']
    #allocation7 [shape = 'u8[65536]{0}', space=vmem, size = 0x10000, scoped, tag = 'input window, operand 3, single buffered']
    #allocation8 [shape = 'u8[65536]{0}', space=vmem, size = 0x10000, scoped, tag = 'input window, operand 5, single buffered']
    #allocation9 [shape = 's32[1]{0}', space=sflag, size = 0x4, scoped, tag = 'scoped memory for tpu_custom_call.1']
    #allocation10 [shape = 'u8[65536]{0}', space=vmem, size = 0x10000, scoped, tag = 'input window, operand 7, single buffered']
    #allocation11 [shape = 'u8[131072]{0}', space=vmem, size = 0x20000, scoped, tag = 'output window, operand 0, single buffered']
    %14 = vsyncpa [#allocation3], 0
    %15 = vsyncpa [#allocation6], 0
    %16 = vsyncpa [#allocation9], 0
    %17 = vsyncpa [#allocation4], 0
    // Predicated region
    $region2: #{tpu_custom_call.1} parent=1 // pred_check
      _
    $region3: #{tpu_custom_call.1} parent=1 // pred_check_branch
      %19 = sbr.rel (0) target = $region5
    $region4: #{tpu_custom_call.1} parent=1 // pred_region
      %s21 = ssub.s32 4096, 4096
      %22 = vsyncadd [#allocation3], %s21
      %s23 = sshll.u32 [#allocation2], 4
      %s24 = int_to_ptr.vmem [resolvable:$true] %s23
      %29 = dma.hbm_to_vmem [thread:$0]  %s0, 4096, %s24, [#allocation3], 128, 128, 8
    $region5: #{tpu_custom_call.1} parent=1 // pred_fallthru
      _
    // Predicated region
    $region6: #{tpu_custom_call.1} parent=1 // pred_check
      _
    $region7: #{tpu_custom_call.1} parent=1 // pred_check_branch
      %31 = sbr.rel (0) target = $region9
    $region8: #{tpu_custom_call.1} parent=1 // pred_region
      %s33 = ssub.s32 2048, 2048
      %34 = vsyncadd [#allocation6], %s33
      %s35 = sshll.u32 [#allocation5], 4
      %s36 = int_to_ptr.vmem [resolvable:$true] %s35
      %41 = dma.hbm_to_vmem [thread:$0]  %s1, 2048, %s36, [#allocation6], 128, 128, 8
    $region9: #{tpu_custom_call.1} parent=1 // pred_fallthru
      _
    // Predicated region
    $region10: #{tpu_custom_call.1} parent=1 // pred_check
      _
    $region11: #{tpu_custom_call.1} parent=1 // pred_check_branch
      %43 = sbr.rel (0) target = $region13
    $region12: #{tpu_custom_call.1} parent=1 // pred_region
      _
    $region13: #{tpu_custom_call.1} parent=1 // pred_fallthru
      _
    // Predicated region
    $region14: #{tpu_custom_call.1} parent=1 // pred_check
      _
    $region15: #{tpu_custom_call.1} parent=1 // pred_check_branch
      %45 = sbr.rel (0) target = $region17
    $region16: #{tpu_custom_call.1} parent=1 // pred_region
      %s47 = ssub.s32 2048, 2048
      %48 = vsyncadd [#allocation6], %s47
      %s49 = sshll.u32 [#allocation7], 4
      %s50 = int_to_ptr.vmem [resolvable:$true] %s49
      %55 = dma.hbm_to_vmem [thread:$0]  %s3, 2048, %s50, [#allocation6], 128, 128, 8
    $region17: #{tpu_custom_call.1} parent=1 // pred_fallthru
      _
    // Predicated region
    $region18: #{tpu_custom_call.1} parent=1 // pred_check
      _
    $region19: #{tpu_custom_call.1} parent=1 // pred_check_branch
      %57 = sbr.rel (0) target = $region21
    $region20: #{tpu_custom_call.1} parent=1 // pred_region
      _
    $region21: #{tpu_custom_call.1} parent=1 // pred_fallthru
      _
    // Predicated region
    $region22: #{tpu_custom_call.1} parent=1 // pred_check
      _
    $region23: #{tpu_custom_call.1} parent=1 // pred_check_branch
      %59 = sbr.rel (0) target = $region25
    $region24: #{tpu_custom_call.1} parent=1 // pred_region
      %s61 = ssub.s32 2048, 2048
      %62 = vsyncadd [#allocation9], %s61
      %s63 = sshll.u32 [#allocation8], 4
      %s64 = int_to_ptr.vmem [resolvable:$true] %s63
      %69 = dma.hbm_to_vmem [thread:$0]  %s5, 2048, %s64, [#allocation9], 128, 128, 8
    $region25: #{tpu_custom_call.1} parent=1 // pred_fallthru
      _
    // Predicated region
    $region26: #{tpu_custom_call.1} parent=1 // pred_check
      _
    $region27: #{tpu_custom_call.1} parent=1 // pred_check_branch
      %71 = sbr.rel (0) target = $region29
    $region28: #{tpu_custom_call.1} parent=1 // pred_region
      _
    $region29: #{tpu_custom_call.1} parent=1 // pred_fallthru
      _
    // Predicated region
    $region30: #{tpu_custom_call.1} parent=1 // pred_check
      _
    $region31: #{tpu_custom_call.1} parent=1 // pred_check_branch
      %73 = sbr.rel (0) target = $region33
    $region32: #{tpu_custom_call.1} parent=1 // pred_region
      %s75 = ssub.s32 2048, 2048
      %76 = vsyncadd [#allocation9], %s75
      %s77 = sshll.u32 [#allocation10], 4
      %s78 = int_to_ptr.vmem [resolvable:$true] %s77
      %83 = dma.hbm_to_vmem [thread:$0]  %s7, 2048, %s78, [#allocation9], 128, 128, 8
    $region33: #{tpu_custom_call.1} parent=1 // pred_fallthru
      _
    // Predicated region
    $region34: #{tpu_custom_call.1} parent=1 // pred_check
      _
    $region35: #{tpu_custom_call.1} parent=1 // pred_check_branch
      %85 = sbr.rel (0) target = $region37
    $region36: #{tpu_custom_call.1} parent=1 // pred_region
      _
    $region37: #{tpu_custom_call.1} parent=1 // pred_fallthru
      _
    // Predicated region
    $region38: #{tpu_custom_call.1} parent=1 // pred_check
      _
    $region39: #{tpu_custom_call.1} parent=1 // pred_check_branch
      %87 = sbr.rel (0) target = $region41
    $region40: #{tpu_custom_call.1} parent=1 // pred_region
      %88 = dma.done [#allocation3], 4096
    $region41: #{tpu_custom_call.1} parent=1 // pred_fallthru
      _
    // Predicated region
    $region42: #{tpu_custom_call.1} parent=1 // pred_check
      _
    $region43: #{tpu_custom_call.1} parent=1 // pred_check_branch
      %90 = sbr.rel (0) target = $region45
    $region44: #{tpu_custom_call.1} parent=1 // pred_region
      %91 = dma.done [#allocation6], 2048
    $region45: #{tpu_custom_call.1} parent=1 // pred_fallthru
      _
    // Predicated region
    $region46: #{tpu_custom_call.1} parent=1 // pred_check
      _
    $region47: #{tpu_custom_call.1} parent=1 // pred_check_branch
      %93 = sbr.rel (0) target = $region49
    $region48: #{tpu_custom_call.1} parent=1 // pred_region
      %94 = dma.done [#allocation6], 2048
    $region49: #{tpu_custom_call.1} parent=1 // pred_fallthru
      _
    // Predicated region
    $region50: #{tpu_custom_call.1} parent=1 // pred_check
      _
    $region51: #{tpu_custom_call.1} parent=1 // pred_check_branch
      %96 = sbr.rel (0) target = $region53
    $region52: #{tpu_custom_call.1} parent=1 // pred_region
      %97 = dma.done [#allocation9], 2048
    $region53: #{tpu_custom_call.1} parent=1 // pred_fallthru
      _
    // Predicated region
    $region54: #{tpu_custom_call.1} parent=1 // pred_check
      _
    $region55: #{tpu_custom_call.1} parent=1 // pred_check_branch
      %99 = sbr.rel (0) target = $region57
    $region56: #{tpu_custom_call.1} parent=1 // pred_region
      %100 = dma.done [#allocation9], 2048
    $region57: #{tpu_custom_call.1} parent=1 // pred_fallthru
      _
    %v101 = vld [vmem:[#allocation2] sm:$0xff]
    %v102 = vld [vmem:[#allocation2 + $0x8] sm:$0xff]
    %v103 = vld [vmem:[#allocation2 + $0x10] sm:$0xff]
    %v104 = vld [vmem:[#allocation2 + $0x18] sm:$0xff]
    %v105 = vld [vmem:[#allocation2 + $0x20] sm:$0xff]
    %v106 = vld [vmem:[#allocation2 + $0x28] sm:$0xff]
    %v107 = vld [vmem:[#allocation2 + $0x30] sm:$0xff]
    %v108 = vld [vmem:[#allocation2 + $0x38] sm:$0xff]
    %v109 = vld [vmem:[#allocation2 + $0x40] sm:$0xff]
    %v110 = vld [vmem:[#allocation2 + $0x48] sm:$0xff]
    %v111 = vld [vmem:[#allocation2 + $0x50] sm:$0xff]
    %v112 = vld [vmem:[#allocation2 + $0x58] sm:$0xff]
    %v113 = vld [vmem:[#allocation2 + $0x60] sm:$0xff]
    %v114 = vld [vmem:[#allocation2 + $0x68] sm:$0xff]
    %v115 = vld [vmem:[#allocation2 + $0x70] sm:$0xff]
    %v116 = vld [vmem:[#allocation2 + $0x78] sm:$0xff]
    %v117 = vld [vmem:[#allocation2 + $0x80] sm:$0xff]
    %v118 = vld [vmem:[#allocation2 + $0x88] sm:$0xff]
    %v119 = vld [vmem:[#allocation2 + $0x90] sm:$0xff]
    %v120 = vld [vmem:[#allocation2 + $0x98] sm:$0xff]
    %v121 = vld [vmem:[#allocation2 + $0xa0] sm:$0xff]
    %v122 = vld [vmem:[#allocation2 + $0xa8] sm:$0xff]
    %v123 = vld [vmem:[#allocation2 + $0xb0] sm:$0xff]
    %v124 = vld [vmem:[#allocation2 + $0xb8] sm:$0xff]
    %v125 = vld [vmem:[#allocation2 + $0xc0] sm:$0xff]
    %v126 = vld [vmem:[#allocation2 + $0xc8] sm:$0xff]
    %v127 = vld [vmem:[#allocation2 + $0xd0] sm:$0xff]
    %v128 = vld [vmem:[#allocation2 + $0xd8] sm:$0xff]
    %v129 = vld [vmem:[#allocation2 + $0xe0] sm:$0xff]
    %v130 = vld [vmem:[#allocation2 + $0xe8] sm:$0xff]
    %v131 = vld [vmem:[#allocation2 + $0xf0] sm:$0xff]
    %v132 = vld [vmem:[#allocation2 + $0xf8] sm:$0xff]
    %v133 = vld [vmem:[#allocation5] sm:$0xff]
    %v134 = vld [vmem:[#allocation5 + $0x8] sm:$0xff]
    %v135 = vld [vmem:[#allocation5 + $0x10] sm:$0xff]
    %v136 = vld [vmem:[#allocation5 + $0x18] sm:$0xff]
    %v137 = vld [vmem:[#allocation5 + $0x20] sm:$0xff]
    %v138 = vld [vmem:[#allocation5 + $0x28] sm:$0xff]
    %v139 = vld [vmem:[#allocation5 + $0x30] sm:$0xff]
    %v140 = vld [vmem:[#allocation5 + $0x38] sm:$0xff]
    %v141 = vld [vmem:[#allocation5 + $0x40] sm:$0xff]
    %v142 = vld [vmem:[#allocation5 + $0x48] sm:$0xff]
    %v143 = vld [vmem:[#allocation5 + $0x50] sm:$0xff]
    %v144 = vld [vmem:[#allocation5 + $0x58] sm:$0xff]
    %v145 = vld [vmem:[#allocation5 + $0x60] sm:$0xff]
    %v146 = vld [vmem:[#allocation5 + $0x68] sm:$0xff]
    %v147 = vld [vmem:[#allocation5 + $0x70] sm:$0xff]
    %v148 = vld [vmem:[#allocation5 + $0x78] sm:$0xff]
    %v149 = vld [vmem:[%s2] sm:$0x1]
    %v151 = vlaneseq
    %v152 = vshrl.u32 %v151, 7
    %v153 = vsub.s32 0, %v152
    %v154 = vrot.slane %v149, %v153
    %156 = vmatprep.subr.mxu0 0.0
    %157 = vmatpush1.msra.mxu0 %v133
    %158 = vmatprep.subr.mxu0 0.0
    %159 = vmatpush1.msra.mxu0 %v134
    %160 = vmatprep.subr.mxu0 0.0
    %161 = vmatpush1.msra.mxu0 %v135
    %162 = vmatprep.subr.mxu0 0.0
    %163 = vmatpush1.msra.mxu0 %v136
    %164 = vmatprep.subr.mxu0 0.0
    %165 = vmatpush1.msra.mxu0 %v137
    %166 = vmatprep.subr.mxu0 0.0
    %167 = vmatpush1.msra.mxu0 %v138
    %168 = vmatprep.subr.mxu0 0.0
    %169 = vmatpush1.msra.mxu0 %v139
    %170 = vmatprep.subr.mxu0 0.0
    %171 = vmatpush1.msra.mxu0 %v140
    %172 = vmatprep.subr.mxu0 0.0
    %173 = vmatpush1.msra.mxu0 %v141
    %174 = vmatprep.subr.mxu0 0.0
    %175 = vmatpush1.msra.mxu0 %v142
    %176 = vmatprep.subr.mxu0 0.0
    %177 = vmatpush1.msra.mxu0 %v143
    %178 = vmatprep.subr.mxu0 0.0
    %179 = vmatpush1.msra.mxu0 %v144
    %180 = vmatprep.subr.mxu0 0.0
    %181 = vmatpush1.msra.mxu0 %v145
    %182 = vmatprep.subr.mxu0 0.0
    %183 = vmatpush1.msra.mxu0 %v146
    %184 = vmatprep.subr.mxu0 0.0
    %185 = vmatpush1.msra.mxu0 %v147
    %186 = vmatprep.subr.mxu0 0.0
    %187 = vmatpush1.msra.mxu0 %v148
    %188 = vmatprep.subr.mxu0 0.0
    %189 = vmatpush1.msra.mxu0 0.0
    %190 = vmatprep.subr.mxu0 0.0
    %191 = vmatpush1.msra.mxu0 0.0
    %192 = vmatprep.subr.mxu0 0.0
    %193 = vmatpush1.msra.mxu0 0.0
    %194 = vmatprep.subr.mxu0 0.0
    %195 = vmatpush1.msra.mxu0 0.0
    %196 = vmatprep.subr.mxu0 0.0
    %197 = vmatpush1.msra.mxu0 0.0
    %198 = vmatprep.subr.mxu0 0.0
    %199 = vmatpush1.msra.mxu0 0.0
    %200 = vmatprep.subr.mxu0 0.0
    %201 = vmatpush1.msra.mxu0 0.0
    %202 = vmatprep.subr.mxu0 0.0
    %203 = vmatpush1.msra.mxu0 0.0
    %204 = vmatprep.subr.mxu0 0.0
    %205 = vmatpush1.msra.mxu0 0.0
    %206 = vmatprep.subr.mxu0 0.0
    %207 = vmatpush1.msra.mxu0 0.0
    %208 = vmatprep.subr.mxu0 0.0
    %209 = vmatpush1.msra.mxu0 0.0
    %210 = vmatprep.subr.mxu0 0.0
    %211 = vmatpush1.msra.mxu0 0.0
    %212 = vmatprep.subr.mxu0 0.0
    %213 = vmatpush1.msra.mxu0 0.0
    %214 = vmatprep.subr.mxu0 0.0
    %215 = vmatpush1.msra.mxu0 0.0
    %216 = vmatprep.subr.mxu0 0.0
    %217 = vmatpush1.msra.mxu0 0.0
    %218 = vmatprep.subr.mxu0 0.0
    %219 = vmatpush1.msra.mxu0 0.0
    %220 = vmatprep.mubr.f32.mxu0 0.0
    %221 = vmatmul.mubr.f32.gmra.mrb[0].mxu0 %v101
    %v222 = vpop.f32.mrb[0].mxu0
    %v223 = vadd.f32 %v154, %v222
    %v224 = vpop.f32.mrb[0].mxu0
    %225 = vmatprep.mubr.f32.mxu0 0.0
    %226 = vmatmul.mubr.f32.gmra.mrb[0].mxu0 %v102
    %v227 = vpop.f32.mrb[0].mxu0
    %v228 = vadd.f32 %v154, %v227
    %v229 = vpop.f32.mrb[0].mxu0
    %230 = vmatprep.mubr.f32.mxu0 0.0
    %231 = vmatmul.mubr.f32.gmra.mrb[0].mxu0 %v103
    %v232 = vpop.f32.mrb[0].mxu0
    %v233 = vadd.f32 %v154, %v232
    %v234 = vpop.f32.mrb[0].mxu0
    %235 = vmatprep.mubr.f32.mxu0 0.0
    %236 = vmatmul.mubr.f32.gmra.mrb[0].mxu0 %v104
    %v237 = vpop.f32.mrb[0].mxu0
    %v238 = vadd.f32 %v154, %v237
    %v239 = vpop.f32.mrb[0].mxu0
    %240 = vmatprep.mubr.f32.mxu0 0.0
    %241 = vmatmul.mubr.f32.gmra.mrb[0].mxu0 %v105
    %v242 = vpop.f32.mrb[0].mxu0
    %v243 = vadd.f32 %v154, %v242
    %v244 = vpop.f32.mrb[0].mxu0
    %245 = vmatprep.mubr.f32.mxu0 0.0
    %246 = vmatmul.mubr.f32.gmra.mrb[0].mxu0 %v106
    %v247 = vpop.f32.mrb[0].mxu0
    %v248 = vadd.f32 %v154, %v247
    %v249 = vpop.f32.mrb[0].mxu0
    %250 = vmatprep.mubr.f32.mxu0 0.0
    %251 = vmatmul.mubr.f32.gmra.mrb[0].mxu0 %v107
    %v252 = vpop.f32.mrb[0].mxu0
    %v253 = vadd.f32 %v154, %v252
    %v254 = vpop.f32.mrb[0].mxu0
    %255 = vmatprep.mubr.f32.mxu0 0.0
    %256 = vmatmul.mubr.f32.gmra.mrb[0].mxu0 %v108
    %v257 = vpop.f32.mrb[0].mxu0
    %v258 = vadd.f32 %v154, %v257
    %v259 = vpop.f32.mrb[0].mxu0
    %260 = vmatprep.mubr.f32.mxu0 0.0
    %261 = vmatmul.mubr.f32.gmra.mrb[0].mxu0 %v109
    %v262 = vpop.f32.mrb[0].mxu0
    %v263 = vadd.f32 %v154, %v262
    %v264 = vpop.f32.mrb[0].mxu0
    %265 = vmatprep.mubr.f32.mxu0 0.0
    %266 = vmatmul.mubr.f32.gmra.mrb[0].mxu0 %v110
    %v267 = vpop.f32.mrb[0].mxu0
    %v268 = vadd.f32 %v154, %v267
    %v269 = vpop.f32.mrb[0].mxu0
    %270 = vmatprep.mubr.f32.mxu0 0.0
    %271 = vmatmul.mubr.f32.gmra.mrb[0].mxu0 %v111
    %v272 = vpop.f32.mrb[0].mxu0
    %v273 = vadd.f32 %v154, %v272
    %v274 = vpop.f32.mrb[0].mxu0
    %275 = vmatprep.mubr.f32.mxu0 0.0
    %276 = vmatmul.mubr.f32.gmra.mrb[0].mxu0 %v112
    %v277 = vpop.f32.mrb[0].mxu0
    %v278 = vadd.f32 %v154, %v277
    %v279 = vpop.f32.mrb[0].mxu0
    %280 = vmatprep.mubr.f32.mxu0 0.0
    %281 = vmatmul.mubr.f32.gmra.mrb[0].mxu0 %v113
    %v282 = vpop.f32.mrb[0].mxu0
    %v283 = vadd.f32 %v154, %v282
    %v284 = vpop.f32.mrb[0].mxu0
    %285 = vmatprep.mubr.f32.mxu0 0.0
    %286 = vmatmul.mubr.f32.gmra.mrb[0].mxu0 %v114
    %v287 = vpop.f32.mrb[0].mxu0
    %v288 = vadd.f32 %v154, %v287
    %v289 = vpop.f32.mrb[0].mxu0
    %290 = vmatprep.mubr.f32.mxu0 0.0
    %291 = vmatmul.mubr.f32.gmra.mrb[0].mxu0 %v115
    %v292 = vpop.f32.mrb[0].mxu0
    %v293 = vadd.f32 %v154, %v292
    %v294 = vpop.f32.mrb[0].mxu0
    %295 = vmatprep.mubr.f32.mxu0 0.0
    %296 = vmatmul.mubr.f32.gmra.mrb[0].mxu0 %v116
    %v297 = vpop.f32.mrb[0].mxu0
    %v298 = vadd.f32 %v154, %v297
    %v299 = vpop.f32.mrb[0].mxu0
    %300 = vmatprep.mubr.f32.mxu0 0.0
    %301 = vmatmul.mubr.f32.gmra.mrb[0].mxu0 %v117
    %v302 = vpop.f32.mrb[0].mxu0
    %v303 = vadd.f32 %v154, %v302
    %v304 = vpop.f32.mrb[0].mxu0
    %305 = vmatprep.mubr.f32.mxu0 0.0
    %306 = vmatmul.mubr.f32.gmra.mrb[0].mxu0 %v118
    %v307 = vpop.f32.mrb[0].mxu0
    %v308 = vadd.f32 %v154, %v307
    %v309 = vpop.f32.mrb[0].mxu0
    %310 = vmatprep.mubr.f32.mxu0 0.0
    %311 = vmatmul.mubr.f32.gmra.mrb[0].mxu0 %v119
    %v312 = vpop.f32.mrb[0].mxu0
    %v313 = vadd.f32 %v154, %v312
    %v314 = vpop.f32.mrb[0].mxu0
    %315 = vmatprep.mubr.f32.mxu0 0.0
    %316 = vmatmul.mubr.f32.gmra.mrb[0].mxu0 %v120
    %v317 = vpop.f32.mrb[0].mxu0
    %v318 = vadd.f32 %v154, %v317
    %v319 = vpop.f32.mrb[0].mxu0
    %320 = vmatprep.mubr.f32.mxu0 0.0
    %321 = vmatmul.mubr.f32.gmra.mrb[0].mxu0 %v121
    %v322 = vpop.f32.mrb[0].mxu0
    %v323 = vadd.f32 %v154, %v322
    %v324 = vpop.f32.mrb[0].mxu0
    %325 = vmatprep.mubr.f32.mxu0 0.0
    %326 = vmatmul.mubr.f32.gmra.mrb[0].mxu0 %v122
    %v327 = vpop.f32.mrb[0].mxu0
    %v328 = vadd.f32 %v154, %v327
    %v329 = vpop.f32.mrb[0].mxu0
    %330 = vmatprep.mubr.f32.mxu0 0.0
    %331 = vmatmul.mubr.f32.gmra.mrb[0].mxu0 %v123
    %v332 = vpop.f32.mrb[0].mxu0
    %v333 = vadd.f32 %v154, %v332
    %v334 = vpop.f32.mrb[0].mxu0
    %335 = vmatprep.mubr.f32.mxu0 0.0
    %336 = vmatmul.mubr.f32.gmra.mrb[0].mxu0 %v124
    %v337 = vpop.f32.mrb[0].mxu0
    %v338 = vadd.f32 %v154, %v337
    %v339 = vpop.f32.mrb[0].mxu0
    %340 = vmatprep.mubr.f32.mxu0 0.0
    %341 = vmatmul.mubr.f32.gmra.mrb[0].mxu0 %v125
    %v342 = vpop.f32.mrb[0].mxu0
    %v343 = vadd.f32 %v154, %v342
    %v344 = vpop.f32.mrb[0].mxu0
    %345 = vmatprep.mubr.f32.mxu0 0.0
    %346 = vmatmul.mubr.f32.gmra.mrb[0].mxu0 %v126
    %v347 = vpop.f32.mrb[0].mxu0
    %v348 = vadd.f32 %v154, %v347
    %v349 = vpop.f32.mrb[0].mxu0
    %350 = vmatprep.mubr.f32.mxu0 0.0
    %351 = vmatmul.mubr.f32.gmra.mrb[0].mxu0 %v127
    %v352 = vpop.f32.mrb[0].mxu0
    %v353 = vadd.f32 %v154, %v352
    %v354 = vpop.f32.mrb[0].mxu0
    %355 = vmatprep.mubr.f32.mxu0 0.0
    %356 = vmatmul.mubr.f32.gmra.mrb[0].mxu0 %v128
    %v357 = vpop.f32.mrb[0].mxu0
    %v358 = vadd.f32 %v154, %v357
    %v359 = vpop.f32.mrb[0].mxu0
    %360 = vmatprep.mubr.f32.mxu0 0.0
    %361 = vmatmul.mubr.f32.gmra.mrb[0].mxu0 %v129
    %v362 = vpop.f32.mrb[0].mxu0
    %v363 = vadd.f32 %v154, %v362
    %v364 = vpop.f32.mrb[0].mxu0
    %365 = vmatprep.mubr.f32.mxu0 0.0
    %366 = vmatmul.mubr.f32.gmra.mrb[0].mxu0 %v130
    %v367 = vpop.f32.mrb[0].mxu0
    %v368 = vadd.f32 %v154, %v367
    %v369 = vpop.f32.mrb[0].mxu0
    %370 = vmatprep.mubr.f32.mxu0 0.0
    %371 = vmatmul.mubr.f32.gmra.mrb[0].mxu0 %v131
    %v372 = vpop.f32.mrb[0].mxu0
    %v373 = vadd.f32 %v154, %v372
    %v374 = vpop.f32.mrb[0].mxu0
    %375 = vmatprep.mubr.f32.mxu0 0.0
    %376 = vmatmul.mubr.f32.gmra.mrb[0].mxu0 %v132
    %v377 = vpop.f32.mrb[0].mxu0
    %v378 = vadd.f32 %v154, %v377
    %v379 = vpop.f32.mrb[0].mxu0
    %380 = vdwg.mxu0
    %v381 = vmax.f32 %v223, 0.0
    %v382 = vmax.f32 %v228, 0.0
    %v383 = vmax.f32 %v233, 0.0
    %v384 = vmax.f32 %v238, 0.0
    %v385 = vmax.f32 %v243, 0.0
    %v386 = vmax.f32 %v248, 0.0
    %v387 = vmax.f32 %v253, 0.0
    %v388 = vmax.f32 %v258, 0.0
    %v389 = vmax.f32 %v263, 0.0
    %v390 = vmax.f32 %v268, 0.0
    %v391 = vmax.f32 %v273, 0.0
    %v392 = vmax.f32 %v278, 0.0
    %v393 = vmax.f32 %v283, 0.0
    %v394 = vmax.f32 %v288, 0.0
    %v395 = vmax.f32 %v293, 0.0
    %v396 = vmax.f32 %v298, 0.0
    %v397 = vmax.f32 %v303, 0.0
    %v398 = vmax.f32 %v308, 0.0
    %v399 = vmax.f32 %v313, 0.0
    %v400 = vmax.f32 %v318, 0.0
    %v401 = vmax.f32 %v323, 0.0
    %v402 = vmax.f32 %v328, 0.0
    %v403 = vmax.f32 %v333, 0.0
    %v404 = vmax.f32 %v338, 0.0
    %v405 = vmax.f32 %v343, 0.0
    %v406 = vmax.f32 %v348, 0.0
    %v407 = vmax.f32 %v353, 0.0
    %v408 = vmax.f32 %v358, 0.0
    %v409 = vmax.f32 %v363, 0.0
    %v410 = vmax.f32 %v368, 0.0
    %v411 = vmax.f32 %v373, 0.0
    %v412 = vmax.f32 %v378, 0.0
    %v413 = vld [vmem:[#allocation7] sm:$0xff]
    %v414 = vld [vmem:[#allocation7 + $0x8] sm:$0xff]
    %v415 = vld [vmem:[#allocation7 + $0x10] sm:$0xff]
    %v416 = vld [vmem:[#allocation7 + $0x18] sm:$0xff]
    %v417 = vld [vmem:[#allocation7 + $0x20] sm:$0xff]
    %v418 = vld [vmem:[#allocation7 + $0x28] sm:$0xff]
    %v419 = vld [vmem:[#allocation7 + $0x30] sm:$0xff]
    %v420 = vld [vmem:[#allocation7 + $0x38] sm:$0xff]
    %v421 = vld [vmem:[#allocation7 + $0x40] sm:$0xff]
    %v422 = vld [vmem:[#allocation7 + $0x48] sm:$0xff]
    %v423 = vld [vmem:[#allocation7 + $0x50] sm:$0xff]
    %v424 = vld [vmem:[#allocation7 + $0x58] sm:$0xff]
    %v425 = vld [vmem:[#allocation7 + $0x60] sm:$0xff]
    %v426 = vld [vmem:[#allocation7 + $0x68] sm:$0xff]
    %v427 = vld [vmem:[#allocation7 + $0x70] sm:$0xff]
    %v428 = vld [vmem:[#allocation7 + $0x78] sm:$0xff]
    %v429 = vld [vmem:[%s4] sm:$0x1]
    %v431 = vlaneseq
    %v432 = vshrl.u32 %v431, 7
    %v433 = vsub.s32 0, %v432
    %v434 = vrot.slane %v429, %v433
    %436 = vmatprep.subr.mxu0 0.0
    %437 = vmatpush1.msra.mxu0 %v413
    %438 = vmatprep.subr.mxu0 0.0
    %439 = vmatpush1.msra.mxu0 %v414
    %440 = vmatprep.subr.mxu0 0.0
    %441 = vmatpush1.msra.mxu0 %v415
    %442 = vmatprep.subr.mxu0 0.0
    %443 = vmatpush1.msra.mxu0 %v416
    %444 = vmatprep.subr.mxu0 0.0
    %445 = vmatpush1.msra.mxu0 %v417
    %446 = vmatprep.subr.mxu0 0.0
    %447 = vmatpush1.msra.mxu0 %v418
    %448 = vmatprep.subr.mxu0 0.0
    %449 = vmatpush1.msra.mxu0 %v419
    %450 = vmatprep.subr.mxu0 0.0
    %451 = vmatpush1.msra.mxu0 %v420
    %452 = vmatprep.subr.mxu0 0.0
    %453 = vmatpush1.msra.mxu0 %v421
    %454 = vmatprep.subr.mxu0 0.0
    %455 = vmatpush1.msra.mxu0 %v422
    %456 = vmatprep.subr.mxu0 0.0
    %457 = vmatpush1.msra.mxu0 %v423
    %458 = vmatprep.subr.mxu0 0.0
    %459 = vmatpush1.msra.mxu0 %v424
    %460 = vmatprep.subr.mxu0 0.0
    %461 = vmatpush1.msra.mxu0 %v425
    %462 = vmatprep.subr.mxu0 0.0
    %463 = vmatpush1.msra.mxu0 %v426
    %464 = vmatprep.subr.mxu0 0.0
    %465 = vmatpush1.msra.mxu0 %v427
    %466 = vmatprep.subr.mxu0 0.0
    %467 = vmatpush1.msra.mxu0 %v428
    %468 = vmatprep.subr.mxu0 0.0
    %469 = vmatpush1.msra.mxu0 0.0
    %470 = vmatprep.subr.mxu0 0.0
    %471 = vmatpush1.msra.mxu0 0.0
    %472 = vmatprep.subr.mxu0 0.0
    %473 = vmatpush1.msra.mxu0 0.0
    %474 = vmatprep.subr.mxu0 0.0
    %475 = vmatpush1.msra.mxu0 0.0
    %476 = vmatprep.subr.mxu0 0.0
    %477 = vmatpush1.msra.mxu0 0.0
    %478 = vmatprep.subr.mxu0 0.0
    %479 = vmatpush1.msra.mxu0 0.0
    %480 = vmatprep.subr.mxu0 0.0
    %481 = vmatpush1.msra.mxu0 0.0
    %482 = vmatprep.subr.mxu0 0.0
    %483 = vmatpush1.msra.mxu0 0.0
    %484 = vmatprep.subr.mxu0 0.0
    %485 = vmatpush1.msra.mxu0 0.0
    %486 = vmatprep.subr.mxu0 0.0
    %487 = vmatpush1.msra.mxu0 0.0
    %488 = vmatprep.subr.mxu0 0.0
    %489 = vmatpush1.msra.mxu0 0.0
    %490 = vmatprep.subr.mxu0 0.0
    %491 = vmatpush1.msra.mxu0 0.0
    %492 = vmatprep.subr.mxu0 0.0
    %493 = vmatpush1.msra.mxu0 0.0
    %494 = vmatprep.subr.mxu0 0.0
    %495 = vmatpush1.msra.mxu0 0.0
    %496 = vmatprep.subr.mxu0 0.0
    %497 = vmatpush1.msra.mxu0 0.0
    %498 = vmatprep.subr.mxu0 0.0
    %499 = vmatpush1.msra.mxu0 0.0
    %500 = vmatprep.mubr.f32.mxu0 0.0
    %501 = vmatmul.mubr.f32.gmra.mrb[0].mxu0 %v381
    %v502 = vpop.f32.mrb[0].mxu0
    %v503 = vadd.f32 %v434, %v502
    %v504 = vpop.f32.mrb[0].mxu0
    %505 = vmatprep.mubr.f32.mxu0 0.0
    %506 = vmatmul.mubr.f32.gmra.mrb[0].mxu0 %v382
    %v507 = vpop.f32.mrb[0].mxu0
    %v508 = vadd.f32 %v434, %v507
    %v509 = vpop.f32.mrb[0].mxu0
    %510 = vmatprep.mubr.f32.mxu0 0.0
    %511 = vmatmul.mubr.f32.gmra.mrb[0].mxu0 %v383
    %v512 = vpop.f32.mrb[0].mxu0
    %v513 = vadd.f32 %v434, %v512
    %v514 = vpop.f32.mrb[0].mxu0
    %515 = vmatprep.mubr.f32.mxu0 0.0
    %516 = vmatmul.mubr.f32.gmra.mrb[0].mxu0 %v384
    %v517 = vpop.f32.mrb[0].mxu0
    %v518 = vadd.f32 %v434, %v517
    %v519 = vpop.f32.mrb[0].mxu0
    %520 = vmatprep.mubr.f32.mxu0 0.0
    %521 = vmatmul.mubr.f32.gmra.mrb[0].mxu0 %v385
    %v522 = vpop.f32.mrb[0].mxu0
    %v523 = vadd.f32 %v434, %v522
    %v524 = vpop.f32.mrb[0].mxu0
    %525 = vmatprep.mubr.f32.mxu0 0.0
    %526 = vmatmul.mubr.f32.gmra.mrb[0].mxu0 %v386
    %v527 = vpop.f32.mrb[0].mxu0
    %v528 = vadd.f32 %v434, %v527
    %v529 = vpop.f32.mrb[0].mxu0
    %530 = vmatprep.mubr.f32.mxu0 0.0
    %531 = vmatmul.mubr.f32.gmra.mrb[0].mxu0 %v387
    %v532 = vpop.f32.mrb[0].mxu0
    %v533 = vadd.f32 %v434, %v532
    %v534 = vpop.f32.mrb[0].mxu0
    %535 = vmatprep.mubr.f32.mxu0 0.0
    %536 = vmatmul.mubr.f32.gmra.mrb[0].mxu0 %v388
    %v537 = vpop.f32.mrb[0].mxu0
    %v538 = vadd.f32 %v434, %v537
    %v539 = vpop.f32.mrb[0].mxu0
    %540 = vmatprep.mubr.f32.mxu0 0.0
    %541 = vmatmul.mubr.f32.gmra.mrb[0].mxu0 %v389
    %v542 = vpop.f32.mrb[0].mxu0
    %v543 = vadd.f32 %v434, %v542
    %v544 = vpop.f32.mrb[0].mxu0
    %545 = vmatprep.mubr.f32.mxu0 0.0
    %546 = vmatmul.mubr.f32.gmra.mrb[0].mxu0 %v390
    %v547 = vpop.f32.mrb[0].mxu0
    %v548 = vadd.f32 %v434, %v547
    %v549 = vpop.f32.mrb[0].mxu0
    %550 = vmatprep.mubr.f32.mxu0 0.0
    %551 = vmatmul.mubr.f32.gmra.mrb[0].mxu0 %v391
    %v552 = vpop.f32.mrb[0].mxu0
    %v553 = vadd.f32 %v434, %v552
    %v554 = vpop.f32.mrb[0].mxu0
    %555 = vmatprep.mubr.f32.mxu0 0.0
    %556 = vmatmul.mubr.f32.gmra.mrb[0].mxu0 %v392
    %v557 = vpop.f32.mrb[0].mxu0
    %v558 = vadd.f32 %v434, %v557
    %v559 = vpop.f32.mrb[0].mxu0
    %560 = vmatprep.mubr.f32.mxu0 0.0
    %561 = vmatmul.mubr.f32.gmra.mrb[0].mxu0 %v393
    %v562 = vpop.f32.mrb[0].mxu0
    %v563 = vadd.f32 %v434, %v562
    %v564 = vpop.f32.mrb[0].mxu0
    %565 = vmatprep.mubr.f32.mxu0 0.0
    %566 = vmatmul.mubr.f32.gmra.mrb[0].mxu0 %v394
    %v567 = vpop.f32.mrb[0].mxu0
    %v568 = vadd.f32 %v434, %v567
    %v569 = vpop.f32.mrb[0].mxu0
    %570 = vmatprep.mubr.f32.mxu0 0.0
    %571 = vmatmul.mubr.f32.gmra.mrb[0].mxu0 %v395
    %v572 = vpop.f32.mrb[0].mxu0
    %v573 = vadd.f32 %v434, %v572
    %v574 = vpop.f32.mrb[0].mxu0
    %575 = vmatprep.mubr.f32.mxu0 0.0
    %576 = vmatmul.mubr.f32.gmra.mrb[0].mxu0 %v396
    %v577 = vpop.f32.mrb[0].mxu0
    %v578 = vadd.f32 %v434, %v577
    %v579 = vpop.f32.mrb[0].mxu0
    %580 = vmatprep.mubr.f32.mxu0 0.0
    %581 = vmatmul.mubr.f32.gmra.mrb[0].mxu0 %v397
    %v582 = vpop.f32.mrb[0].mxu0
    %v583 = vadd.f32 %v434, %v582
    %v584 = vpop.f32.mrb[0].mxu0
    %585 = vmatprep.mubr.f32.mxu0 0.0
    %586 = vmatmul.mubr.f32.gmra.mrb[0].mxu0 %v398
    %v587 = vpop.f32.mrb[0].mxu0
    %v588 = vadd.f32 %v434, %v587
    %v589 = vpop.f32.mrb[0].mxu0
    %590 = vmatprep.mubr.f32.mxu0 0.0
    %591 = vmatmul.mubr.f32.gmra.mrb[0].mxu0 %v399
    %v592 = vpop.f32.mrb[0].mxu0
    %v593 = vadd.f32 %v434, %v592
    %v594 = vpop.f32.mrb[0].mxu0
    %595 = vmatprep.mubr.f32.mxu0 0.0
    %596 = vmatmul.mubr.f32.gmra.mrb[0].mxu0 %v400
    %v597 = vpop.f32.mrb[0].mxu0
    %v598 = vadd.f32 %v434, %v597
    %v599 = vpop.f32.mrb[0].mxu0
    %600 = vmatprep.mubr.f32.mxu0 0.0
    %601 = vmatmul.mubr.f32.gmra.mrb[0].mxu0 %v401
    %v602 = vpop.f32.mrb[0].mxu0
    %v603 = vadd.f32 %v434, %v602
    %v604 = vpop.f32.mrb[0].mxu0
    %605 = vmatprep.mubr.f32.mxu0 0.0
    %606 = vmatmul.mubr.f32.gmra.mrb[0].mxu0 %v402
    %v607 = vpop.f32.mrb[0].mxu0
    %v608 = vadd.f32 %v434, %v607
    %v609 = vpop.f32.mrb[0].mxu0
    %610 = vmatprep.mubr.f32.mxu0 0.0
    %611 = vmatmul.mubr.f32.gmra.mrb[0].mxu0 %v403
    %v612 = vpop.f32.mrb[0].mxu0
    %v613 = vadd.f32 %v434, %v612
    %v614 = vpop.f32.mrb[0].mxu0
    %615 = vmatprep.mubr.f32.mxu0 0.0
    %616 = vmatmul.mubr.f32.gmra.mrb[0].mxu0 %v404
    %v617 = vpop.f32.mrb[0].mxu0
    %v618 = vadd.f32 %v434, %v617
    %v619 = vpop.f32.mrb[0].mxu0
    %620 = vmatprep.mubr.f32.mxu0 0.0
    %621 = vmatmul.mubr.f32.gmra.mrb[0].mxu0 %v405
    %v622 = vpop.f32.mrb[0].mxu0
    %v623 = vadd.f32 %v434, %v622
    %v624 = vpop.f32.mrb[0].mxu0
    %625 = vmatprep.mubr.f32.mxu0 0.0
    %626 = vmatmul.mubr.f32.gmra.mrb[0].mxu0 %v406
    %v627 = vpop.f32.mrb[0].mxu0
    %v628 = vadd.f32 %v434, %v627
    %v629 = vpop.f32.mrb[0].mxu0
    %630 = vmatprep.mubr.f32.mxu0 0.0
    %631 = vmatmul.mubr.f32.gmra.mrb[0].mxu0 %v407
    %v632 = vpop.f32.mrb[0].mxu0
    %v633 = vadd.f32 %v434, %v632
    %v634 = vpop.f32.mrb[0].mxu0
    %635 = vmatprep.mubr.f32.mxu0 0.0
    %636 = vmatmul.mubr.f32.gmra.mrb[0].mxu0 %v408
    %v637 = vpop.f32.mrb[0].mxu0
    %v638 = vadd.f32 %v434, %v637
    %v639 = vpop.f32.mrb[0].mxu0
    %640 = vmatprep.mubr.f32.mxu0 0.0
    %641 = vmatmul.mubr.f32.gmra.mrb[0].mxu0 %v409
    %v642 = vpop.f32.mrb[0].mxu0
    %v643 = vadd.f32 %v434, %v642
    %v644 = vpop.f32.mrb[0].mxu0
    %645 = vmatprep.mubr.f32.mxu0 0.0
    %646 = vmatmul.mubr.f32.gmra.mrb[0].mxu0 %v410
    %v647 = vpop.f32.mrb[0].mxu0
    %v648 = vadd.f32 %v434, %v647
    %v649 = vpop.f32.mrb[0].mxu0
    %650 = vmatprep.mubr.f32.mxu0 0.0
    %651 = vmatmul.mubr.f32.gmra.mrb[0].mxu0 %v411
    %v652 = vpop.f32.mrb[0].mxu0
    %v653 = vadd.f32 %v434, %v652
    %v654 = vpop.f32.mrb[0].mxu0
    %655 = vmatprep.mubr.f32.mxu0 0.0
    %656 = vmatmul.mubr.f32.gmra.mrb[0].mxu0 %v412
    %v657 = vpop.f32.mrb[0].mxu0
    %v658 = vadd.f32 %v434, %v657
    %v659 = vpop.f32.mrb[0].mxu0
    %660 = vdwg.mxu0
    %v661 = vmax.f32 %v503, 0.0
    %v662 = vmax.f32 %v508, 0.0
    %v663 = vmax.f32 %v513, 0.0
    %v664 = vmax.f32 %v518, 0.0
    %v665 = vmax.f32 %v523, 0.0
    %v666 = vmax.f32 %v528, 0.0
    %v667 = vmax.f32 %v533, 0.0
    %v668 = vmax.f32 %v538, 0.0
    %v669 = vmax.f32 %v543, 0.0
    %v670 = vmax.f32 %v548, 0.0
    %v671 = vmax.f32 %v553, 0.0
    %v672 = vmax.f32 %v558, 0.0
    %v673 = vmax.f32 %v563, 0.0
    %v674 = vmax.f32 %v568, 0.0
    %v675 = vmax.f32 %v573, 0.0
    %v676 = vmax.f32 %v578, 0.0
    %v677 = vmax.f32 %v583, 0.0
    %v678 = vmax.f32 %v588, 0.0
    %v679 = vmax.f32 %v593, 0.0
    %v680 = vmax.f32 %v598, 0.0
    %v681 = vmax.f32 %v603, 0.0
    %v682 = vmax.f32 %v608, 0.0
    %v683 = vmax.f32 %v613, 0.0
    %v684 = vmax.f32 %v618, 0.0
    %v685 = vmax.f32 %v623, 0.0
    %v686 = vmax.f32 %v628, 0.0
    %v687 = vmax.f32 %v633, 0.0
    %v688 = vmax.f32 %v638, 0.0
    %v689 = vmax.f32 %v643, 0.0
    %v690 = vmax.f32 %v648, 0.0
    %v691 = vmax.f32 %v653, 0.0
    %v692 = vmax.f32 %v658, 0.0
    %v693 = vld [vmem:[#allocation8] sm:$0xff]
    %v694 = vld [vmem:[#allocation8 + $0x8] sm:$0xff]
    %v695 = vld [vmem:[#allocation8 + $0x10] sm:$0xff]
    %v696 = vld [vmem:[#allocation8 + $0x18] sm:$0xff]
    %v697 = vld [vmem:[#allocation8 + $0x20] sm:$0xff]
    %v698 = vld [vmem:[#allocation8 + $0x28] sm:$0xff]
    %v699 = vld [vmem:[#allocation8 + $0x30] sm:$0xff]
    %v700 = vld [vmem:[#allocation8 + $0x38] sm:$0xff]
    %v701 = vld [vmem:[#allocation8 + $0x40] sm:$0xff]
    %v702 = vld [vmem:[#allocation8 + $0x48] sm:$0xff]
    %v703 = vld [vmem:[#allocation8 + $0x50] sm:$0xff]
    %v704 = vld [vmem:[#allocation8 + $0x58] sm:$0xff]
    %v705 = vld [vmem:[#allocation8 + $0x60] sm:$0xff]
    %v706 = vld [vmem:[#allocation8 + $0x68] sm:$0xff]
    %v707 = vld [vmem:[#allocation8 + $0x70] sm:$0xff]
    %v708 = vld [vmem:[#allocation8 + $0x78] sm:$0xff]
    %v709 = vld [vmem:[%s6] sm:$0x1]
    %v711 = vlaneseq
    %v712 = vshrl.u32 %v711, 7
    %v713 = vsub.s32 0, %v712
    %v714 = vrot.slane %v709, %v713
    %716 = vmatprep.subr.mxu0 0.0
    %717 = vmatpush1.msra.mxu0 %v693
    %718 = vmatprep.subr.mxu0 0.0
    %719 = vmatpush1.msra.mxu0 %v694
    %720 = vmatprep.subr.mxu0 0.0
    %721 = vmatpush1.msra.mxu0 %v695
    %722 = vmatprep.subr.mxu0 0.0
    %723 = vmatpush1.msra.mxu0 %v696
    %724 = vmatprep.subr.mxu0 0.0
    %725 = vmatpush1.msra.mxu0 %v697
    %726 = vmatprep.subr.mxu0 0.0
    %727 = vmatpush1.msra.mxu0 %v698
    %728 = vmatprep.subr.mxu0 0.0
    %729 = vmatpush1.msra.mxu0 %v699
    %730 = vmatprep.subr.mxu0 0.0
    %731 = vmatpush1.msra.mxu0 %v700
    %732 = vmatprep.subr.mxu0 0.0
    %733 = vmatpush1.msra.mxu0 %v701
    %734 = vmatprep.subr.mxu0 0.0
    %735 = vmatpush1.msra.mxu0 %v702
    %736 = vmatprep.subr.mxu0 0.0
    %737 = vmatpush1.msra.mxu0 %v703
    %738 = vmatprep.subr.mxu0 0.0
    %739 = vmatpush1.msra.mxu0 %v704
    %740 = vmatprep.subr.mxu0 0.0
    %741 = vmatpush1.msra.mxu0 %v705
    %742 = vmatprep.subr.mxu0 0.0
    %743 = vmatpush1.msra.mxu0 %v706
    %744 = vmatprep.subr.mxu0 0.0
    %745 = vmatpush1.msra.mxu0 %v707
    %746 = vmatprep.subr.mxu0 0.0
    %747 = vmatpush1.msra.mxu0 %v708
    %748 = vmatprep.subr.mxu0 0.0
    %749 = vmatpush1.msra.mxu0 0.0
    %750 = vmatprep.subr.mxu0 0.0
    %751 = vmatpush1.msra.mxu0 0.0
    %752 = vmatprep.subr.mxu0 0.0
    %753 = vmatpush1.msra.mxu0 0.0
    %754 = vmatprep.subr.mxu0 0.0
    %755 = vmatpush1.msra.mxu0 0.0
    %756 = vmatprep.subr.mxu0 0.0
    %757 = vmatpush1.msra.mxu0 0.0
    %758 = vmatprep.subr.mxu0 0.0
    %759 = vmatpush1.msra.mxu0 0.0
    %760 = vmatprep.subr.mxu0 0.0
    %761 = vmatpush1.msra.mxu0 0.0
    %762 = vmatprep.subr.mxu0 0.0
    %763 = vmatpush1.msra.mxu0 0.0
    %764 = vmatprep.subr.mxu0 0.0
    %765 = vmatpush1.msra.mxu0 0.0
    %766 = vmatprep.subr.mxu0 0.0
    %767 = vmatpush1.msra.mxu0 0.0
    %768 = vmatprep.subr.mxu0 0.0
    %769 = vmatpush1.msra.mxu0 0.0
    %770 = vmatprep.subr.mxu0 0.0
    %771 = vmatpush1.msra.mxu0 0.0
    %772 = vmatprep.subr.mxu0 0.0
    %773 = vmatpush1.msra.mxu0 0.0
    %774 = vmatprep.subr.mxu0 0.0
    %775 = vmatpush1.msra.mxu0 0.0
    %776 = vmatprep.subr.mxu0 0.0
    %777 = vmatpush1.msra.mxu0 0.0
    %778 = vmatprep.subr.mxu0 0.0
    %779 = vmatpush1.msra.mxu0 0.0
    %780 = vmatprep.mubr.f32.mxu0 0.0
    %781 = vmatmul.mubr.f32.gmra.mrb[0].mxu0 %v661
    %v782 = vpop.f32.mrb[0].mxu0
    %v783 = vadd.f32 %v714, %v782
    %v784 = vpop.f32.mrb[0].mxu0
    %785 = vmatprep.mubr.f32.mxu0 0.0
    %786 = vmatmul.mubr.f32.gmra.mrb[0].mxu0 %v662
    %v787 = vpop.f32.mrb[0].mxu0
    %v788 = vadd.f32 %v714, %v787
    %v789 = vpop.f32.mrb[0].mxu0
    %790 = vmatprep.mubr.f32.mxu0 0.0
    %791 = vmatmul.mubr.f32.gmra.mrb[0].mxu0 %v663
    %v792 = vpop.f32.mrb[0].mxu0
    %v793 = vadd.f32 %v714, %v792
    %v794 = vpop.f32.mrb[0].mxu0
    %795 = vmatprep.mubr.f32.mxu0 0.0
    %796 = vmatmul.mubr.f32.gmra.mrb[0].mxu0 %v664
    %v797 = vpop.f32.mrb[0].mxu0
    %v798 = vadd.f32 %v714, %v797
    %v799 = vpop.f32.mrb[0].mxu0
    %800 = vmatprep.mubr.f32.mxu0 0.0
    %801 = vmatmul.mubr.f32.gmra.mrb[0].mxu0 %v665
    %v802 = vpop.f32.mrb[0].mxu0
    %v803 = vadd.f32 %v714, %v802
    %v804 = vpop.f32.mrb[0].mxu0
    %805 = vmatprep.mubr.f32.mxu0 0.0
    %806 = vmatmul.mubr.f32.gmra.mrb[0].mxu0 %v666
    %v807 = vpop.f32.mrb[0].mxu0
    %v808 = vadd.f32 %v714, %v807
    %v809 = vpop.f32.mrb[0].mxu0
    %810 = vmatprep.mubr.f32.mxu0 0.0
    %811 = vmatmul.mubr.f32.gmra.mrb[0].mxu0 %v667
    %v812 = vpop.f32.mrb[0].mxu0
    %v813 = vadd.f32 %v714, %v812
    %v814 = vpop.f32.mrb[0].mxu0
    %815 = vmatprep.mubr.f32.mxu0 0.0
    %816 = vmatmul.mubr.f32.gmra.mrb[0].mxu0 %v668
    %v817 = vpop.f32.mrb[0].mxu0
    %v818 = vadd.f32 %v714, %v817
    %v819 = vpop.f32.mrb[0].mxu0
    %820 = vmatprep.mubr.f32.mxu0 0.0
    %821 = vmatmul.mubr.f32.gmra.mrb[0].mxu0 %v669
    %v822 = vpop.f32.mrb[0].mxu0
    %v823 = vadd.f32 %v714, %v822
    %v824 = vpop.f32.mrb[0].mxu0
    %825 = vmatprep.mubr.f32.mxu0 0.0
    %826 = vmatmul.mubr.f32.gmra.mrb[0].mxu0 %v670
    %v827 = vpop.f32.mrb[0].mxu0
    %v828 = vadd.f32 %v714, %v827
    %v829 = vpop.f32.mrb[0].mxu0
    %830 = vmatprep.mubr.f32.mxu0 0.0
    %831 = vmatmul.mubr.f32.gmra.mrb[0].mxu0 %v671
    %v832 = vpop.f32.mrb[0].mxu0
    %v833 = vadd.f32 %v714, %v832
    %v834 = vpop.f32.mrb[0].mxu0
    %835 = vmatprep.mubr.f32.mxu0 0.0
    %836 = vmatmul.mubr.f32.gmra.mrb[0].mxu0 %v672
    %v837 = vpop.f32.mrb[0].mxu0
    %v838 = vadd.f32 %v714, %v837
    %v839 = vpop.f32.mrb[0].mxu0
    %840 = vmatprep.mubr.f32.mxu0 0.0
    %841 = vmatmul.mubr.f32.gmra.mrb[0].mxu0 %v673
    %v842 = vpop.f32.mrb[0].mxu0
    %v843 = vadd.f32 %v714, %v842
    %v844 = vpop.f32.mrb[0].mxu0
    %845 = vmatprep.mubr.f32.mxu0 0.0
    %846 = vmatmul.mubr.f32.gmra.mrb[0].mxu0 %v674
    %v847 = vpop.f32.mrb[0].mxu0
    %v848 = vadd.f32 %v714, %v847
    %v849 = vpop.f32.mrb[0].mxu0
    %850 = vmatprep.mubr.f32.mxu0 0.0
    %851 = vmatmul.mubr.f32.gmra.mrb[0].mxu0 %v675
    %v852 = vpop.f32.mrb[0].mxu0
    %v853 = vadd.f32 %v714, %v852
    %v854 = vpop.f32.mrb[0].mxu0
    %855 = vmatprep.mubr.f32.mxu0 0.0
    %856 = vmatmul.mubr.f32.gmra.mrb[0].mxu0 %v676
    %v857 = vpop.f32.mrb[0].mxu0
    %v858 = vadd.f32 %v714, %v857
    %v859 = vpop.f32.mrb[0].mxu0
    %860 = vmatprep.mubr.f32.mxu0 0.0
    %861 = vmatmul.mubr.f32.gmra.mrb[0].mxu0 %v677
    %v862 = vpop.f32.mrb[0].mxu0
    %v863 = vadd.f32 %v714, %v862
    %v864 = vpop.f32.mrb[0].mxu0
    %865 = vmatprep.mubr.f32.mxu0 0.0
    %866 = vmatmul.mubr.f32.gmra.mrb[0].mxu0 %v678
    %v867 = vpop.f32.mrb[0].mxu0
    %v868 = vadd.f32 %v714, %v867
    %v869 = vpop.f32.mrb[0].mxu0
    %870 = vmatprep.mubr.f32.mxu0 0.0
    %871 = vmatmul.mubr.f32.gmra.mrb[0].mxu0 %v679
    %v872 = vpop.f32.mrb[0].mxu0
    %v873 = vadd.f32 %v714, %v872
    %v874 = vpop.f32.mrb[0].mxu0
    %875 = vmatprep.mubr.f32.mxu0 0.0
    %876 = vmatmul.mubr.f32.gmra.mrb[0].mxu0 %v680
    %v877 = vpop.f32.mrb[0].mxu0
    %v878 = vadd.f32 %v714, %v877
    %v879 = vpop.f32.mrb[0].mxu0
    %880 = vmatprep.mubr.f32.mxu0 0.0
    %881 = vmatmul.mubr.f32.gmra.mrb[0].mxu0 %v681
    %v882 = vpop.f32.mrb[0].mxu0
    %v883 = vadd.f32 %v714, %v882
    %v884 = vpop.f32.mrb[0].mxu0
    %885 = vmatprep.mubr.f32.mxu0 0.0
    %886 = vmatmul.mubr.f32.gmra.mrb[0].mxu0 %v682
    %v887 = vpop.f32.mrb[0].mxu0
    %v888 = vadd.f32 %v714, %v887
    %v889 = vpop.f32.mrb[0].mxu0
    %890 = vmatprep.mubr.f32.mxu0 0.0
    %891 = vmatmul.mubr.f32.gmra.mrb[0].mxu0 %v683
    %v892 = vpop.f32.mrb[0].mxu0
    %v893 = vadd.f32 %v714, %v892
    %v894 = vpop.f32.mrb[0].mxu0
    %895 = vmatprep.mubr.f32.mxu0 0.0
    %896 = vmatmul.mubr.f32.gmra.mrb[0].mxu0 %v684
    %v897 = vpop.f32.mrb[0].mxu0
    %v898 = vadd.f32 %v714, %v897
    %v899 = vpop.f32.mrb[0].mxu0
    %900 = vmatprep.mubr.f32.mxu0 0.0
    %901 = vmatmul.mubr.f32.gmra.mrb[0].mxu0 %v685
    %v902 = vpop.f32.mrb[0].mxu0
    %v903 = vadd.f32 %v714, %v902
    %v904 = vpop.f32.mrb[0].mxu0
    %905 = vmatprep.mubr.f32.mxu0 0.0
    %906 = vmatmul.mubr.f32.gmra.mrb[0].mxu0 %v686
    %v907 = vpop.f32.mrb[0].mxu0
    %v908 = vadd.f32 %v714, %v907
    %v909 = vpop.f32.mrb[0].mxu0
    %910 = vmatprep.mubr.f32.mxu0 0.0
    %911 = vmatmul.mubr.f32.gmra.mrb[0].mxu0 %v687
    %v912 = vpop.f32.mrb[0].mxu0
    %v913 = vadd.f32 %v714, %v912
    %v914 = vpop.f32.mrb[0].mxu0
    %915 = vmatprep.mubr.f32.mxu0 0.0
    %916 = vmatmul.mubr.f32.gmra.mrb[0].mxu0 %v688
    %v917 = vpop.f32.mrb[0].mxu0
    %v918 = vadd.f32 %v714, %v917
    %v919 = vpop.f32.mrb[0].mxu0
    %920 = vmatprep.mubr.f32.mxu0 0.0
    %921 = vmatmul.mubr.f32.gmra.mrb[0].mxu0 %v689
    %v922 = vpop.f32.mrb[0].mxu0
    %v923 = vadd.f32 %v714, %v922
    %v924 = vpop.f32.mrb[0].mxu0
    %925 = vmatprep.mubr.f32.mxu0 0.0
    %926 = vmatmul.mubr.f32.gmra.mrb[0].mxu0 %v690
    %v927 = vpop.f32.mrb[0].mxu0
    %v928 = vadd.f32 %v714, %v927
    %v929 = vpop.f32.mrb[0].mxu0
    %930 = vmatprep.mubr.f32.mxu0 0.0
    %931 = vmatmul.mubr.f32.gmra.mrb[0].mxu0 %v691
    %v932 = vpop.f32.mrb[0].mxu0
    %v933 = vadd.f32 %v714, %v932
    %v934 = vpop.f32.mrb[0].mxu0
    %935 = vmatprep.mubr.f32.mxu0 0.0
    %936 = vmatmul.mubr.f32.gmra.mrb[0].mxu0 %v692
    %v937 = vpop.f32.mrb[0].mxu0
    %v938 = vadd.f32 %v714, %v937
    %v939 = vpop.f32.mrb[0].mxu0
    %940 = vdwg.mxu0
    %v941 = vmax.f32 %v783, 0.0
    %v942 = vmax.f32 %v788, 0.0
    %v943 = vmax.f32 %v793, 0.0
    %v944 = vmax.f32 %v798, 0.0
    %v945 = vmax.f32 %v803, 0.0
    %v946 = vmax.f32 %v808, 0.0
    %v947 = vmax.f32 %v813, 0.0
    %v948 = vmax.f32 %v818, 0.0
    %v949 = vmax.f32 %v823, 0.0
    %v950 = vmax.f32 %v828, 0.0
    %v951 = vmax.f32 %v833, 0.0
    %v952 = vmax.f32 %v838, 0.0
    %v953 = vmax.f32 %v843, 0.0
    %v954 = vmax.f32 %v848, 0.0
    %v955 = vmax.f32 %v853, 0.0
    %v956 = vmax.f32 %v858, 0.0
    %v957 = vmax.f32 %v863, 0.0
    %v958 = vmax.f32 %v868, 0.0
    %v959 = vmax.f32 %v873, 0.0
    %v960 = vmax.f32 %v878, 0.0
    %v961 = vmax.f32 %v883, 0.0
    %v962 = vmax.f32 %v888, 0.0
    %v963 = vmax.f32 %v893, 0.0
    %v964 = vmax.f32 %v898, 0.0
    %v965 = vmax.f32 %v903, 0.0
    %v966 = vmax.f32 %v908, 0.0
    %v967 = vmax.f32 %v913, 0.0
    %v968 = vmax.f32 %v918, 0.0
    %v969 = vmax.f32 %v923, 0.0
    %v970 = vmax.f32 %v928, 0.0
    %v971 = vmax.f32 %v933, 0.0
    %v972 = vmax.f32 %v938, 0.0
    %v973 = vld [vmem:[#allocation10] sm:$0xff]
    %v974 = vld [vmem:[#allocation10 + $0x8] sm:$0xff]
    %v975 = vld [vmem:[#allocation10 + $0x10] sm:$0xff]
    %v976 = vld [vmem:[#allocation10 + $0x18] sm:$0xff]
    %v977 = vld [vmem:[#allocation10 + $0x20] sm:$0xff]
    %v978 = vld [vmem:[#allocation10 + $0x28] sm:$0xff]
    %v979 = vld [vmem:[#allocation10 + $0x30] sm:$0xff]
    %v980 = vld [vmem:[#allocation10 + $0x38] sm:$0xff]
    %v981 = vld [vmem:[#allocation10 + $0x40] sm:$0xff]
    %v982 = vld [vmem:[#allocation10 + $0x48] sm:$0xff]
    %v983 = vld [vmem:[#allocation10 + $0x50] sm:$0xff]
    %v984 = vld [vmem:[#allocation10 + $0x58] sm:$0xff]
    %v985 = vld [vmem:[#allocation10 + $0x60] sm:$0xff]
    %v986 = vld [vmem:[#allocation10 + $0x68] sm:$0xff]
    %v987 = vld [vmem:[#allocation10 + $0x70] sm:$0xff]
    %v988 = vld [vmem:[#allocation10 + $0x78] sm:$0xff]
    %v989 = vld [vmem:[%s8] sm:$0x1]
    %v991 = vlaneseq
    %v992 = vshrl.u32 %v991, 7
    %v993 = vsub.s32 0, %v992
    %v994 = vrot.slane %v989, %v993
    %996 = vmatprep.subr.mxu0 0.0
    %997 = vmatpush1.msra.mxu0 %v973
    %998 = vmatprep.subr.mxu0 0.0
    %999 = vmatpush1.msra.mxu0 %v974
    %1000 = vmatprep.subr.mxu0 0.0
    %1001 = vmatpush1.msra.mxu0 %v975
    %1002 = vmatprep.subr.mxu0 0.0
    %1003 = vmatpush1.msra.mxu0 %v976
    %1004 = vmatprep.subr.mxu0 0.0
    %1005 = vmatpush1.msra.mxu0 %v977
    %1006 = vmatprep.subr.mxu0 0.0
    %1007 = vmatpush1.msra.mxu0 %v978
    %1008 = vmatprep.subr.mxu0 0.0
    %1009 = vmatpush1.msra.mxu0 %v979
    %1010 = vmatprep.subr.mxu0 0.0
    %1011 = vmatpush1.msra.mxu0 %v980
    %1012 = vmatprep.subr.mxu0 0.0
    %1013 = vmatpush1.msra.mxu0 %v981
    %1014 = vmatprep.subr.mxu0 0.0
    %1015 = vmatpush1.msra.mxu0 %v982
    %1016 = vmatprep.subr.mxu0 0.0
    %1017 = vmatpush1.msra.mxu0 %v983
    %1018 = vmatprep.subr.mxu0 0.0
    %1019 = vmatpush1.msra.mxu0 %v984
    %1020 = vmatprep.subr.mxu0 0.0
    %1021 = vmatpush1.msra.mxu0 %v985
    %1022 = vmatprep.subr.mxu0 0.0
    %1023 = vmatpush1.msra.mxu0 %v986
    %1024 = vmatprep.subr.mxu0 0.0
    %1025 = vmatpush1.msra.mxu0 %v987
    %1026 = vmatprep.subr.mxu0 0.0
    %1027 = vmatpush1.msra.mxu0 %v988
    %1028 = vmatprep.subr.mxu0 0.0
    %1029 = vmatpush1.msra.mxu0 0.0
    %1030 = vmatprep.subr.mxu0 0.0
    %1031 = vmatpush1.msra.mxu0 0.0
    %1032 = vmatprep.subr.mxu0 0.0
    %1033 = vmatpush1.msra.mxu0 0.0
    %1034 = vmatprep.subr.mxu0 0.0
    %1035 = vmatpush1.msra.mxu0 0.0
    %1036 = vmatprep.subr.mxu0 0.0
    %1037 = vmatpush1.msra.mxu0 0.0
    %1038 = vmatprep.subr.mxu0 0.0
    %1039 = vmatpush1.msra.mxu0 0.0
    %1040 = vmatprep.subr.mxu0 0.0
    %1041 = vmatpush1.msra.mxu0 0.0
    %1042 = vmatprep.subr.mxu0 0.0
    %1043 = vmatpush1.msra.mxu0 0.0
    %1044 = vmatprep.subr.mxu0 0.0
    %1045 = vmatpush1.msra.mxu0 0.0
    %1046 = vmatprep.subr.mxu0 0.0
    %1047 = vmatpush1.msra.mxu0 0.0
    %1048 = vmatprep.subr.mxu0 0.0
    %1049 = vmatpush1.msra.mxu0 0.0
    %1050 = vmatprep.subr.mxu0 0.0
    %1051 = vmatpush1.msra.mxu0 0.0
    %1052 = vmatprep.subr.mxu0 0.0
    %1053 = vmatpush1.msra.mxu0 0.0
    %1054 = vmatprep.subr.mxu0 0.0
    %1055 = vmatpush1.msra.mxu0 0.0
    %1056 = vmatprep.subr.mxu0 0.0
    %1057 = vmatpush1.msra.mxu0 0.0
    %1058 = vmatprep.subr.mxu0 0.0
    %1059 = vmatpush1.msra.mxu0 0.0
    %1060 = vmatprep.mubr.f32.mxu0 0.0
    %1061 = vmatmul.mubr.f32.gmra.mrb[0].mxu0 %v941
    %v1062 = vpop.f32.mrb[0].mxu0
    %v1063 = vadd.f32 %v994, %v1062
    %v1064 = vpop.f32.mrb[0].mxu0
    %1065 = vmatprep.mubr.f32.mxu0 0.0
    %1066 = vmatmul.mubr.f32.gmra.mrb[0].mxu0 %v942
    %v1067 = vpop.f32.mrb[0].mxu0
    %v1068 = vadd.f32 %v994, %v1067
    %v1069 = vpop.f32.mrb[0].mxu0
    %1070 = vmatprep.mubr.f32.mxu0 0.0
    %1071 = vmatmul.mubr.f32.gmra.mrb[0].mxu0 %v943
    %v1072 = vpop.f32.mrb[0].mxu0
    %v1073 = vadd.f32 %v994, %v1072
    %v1074 = vpop.f32.mrb[0].mxu0
    %1075 = vmatprep.mubr.f32.mxu0 0.0
    %1076 = vmatmul.mubr.f32.gmra.mrb[0].mxu0 %v944
    %v1077 = vpop.f32.mrb[0].mxu0
    %v1078 = vadd.f32 %v994, %v1077
    %v1079 = vpop.f32.mrb[0].mxu0
    %1080 = vmatprep.mubr.f32.mxu0 0.0
    %1081 = vmatmul.mubr.f32.gmra.mrb[0].mxu0 %v945
    %v1082 = vpop.f32.mrb[0].mxu0
    %v1083 = vadd.f32 %v994, %v1082
    %v1084 = vpop.f32.mrb[0].mxu0
    %1085 = vmatprep.mubr.f32.mxu0 0.0
    %1086 = vmatmul.mubr.f32.gmra.mrb[0].mxu0 %v946
    %v1087 = vpop.f32.mrb[0].mxu0
    %v1088 = vadd.f32 %v994, %v1087
    %v1089 = vpop.f32.mrb[0].mxu0
    %1090 = vmatprep.mubr.f32.mxu0 0.0
    %1091 = vmatmul.mubr.f32.gmra.mrb[0].mxu0 %v947
    %v1092 = vpop.f32.mrb[0].mxu0
    %v1093 = vadd.f32 %v994, %v1092
    %v1094 = vpop.f32.mrb[0].mxu0
    %1095 = vmatprep.mubr.f32.mxu0 0.0
    %1096 = vmatmul.mubr.f32.gmra.mrb[0].mxu0 %v948
    %v1097 = vpop.f32.mrb[0].mxu0
    %v1098 = vadd.f32 %v994, %v1097
    %v1099 = vpop.f32.mrb[0].mxu0
    %1100 = vmatprep.mubr.f32.mxu0 0.0
    %1101 = vmatmul.mubr.f32.gmra.mrb[0].mxu0 %v949
    %v1102 = vpop.f32.mrb[0].mxu0
    %v1103 = vadd.f32 %v994, %v1102
    %v1104 = vpop.f32.mrb[0].mxu0
    %1105 = vmatprep.mubr.f32.mxu0 0.0
    %1106 = vmatmul.mubr.f32.gmra.mrb[0].mxu0 %v950
    %v1107 = vpop.f32.mrb[0].mxu0
    %v1108 = vadd.f32 %v994, %v1107
    %v1109 = vpop.f32.mrb[0].mxu0
    %1110 = vmatprep.mubr.f32.mxu0 0.0
    %1111 = vmatmul.mubr.f32.gmra.mrb[0].mxu0 %v951
    %v1112 = vpop.f32.mrb[0].mxu0
    %v1113 = vadd.f32 %v994, %v1112
    %v1114 = vpop.f32.mrb[0].mxu0
    %1115 = vmatprep.mubr.f32.mxu0 0.0
    %1116 = vmatmul.mubr.f32.gmra.mrb[0].mxu0 %v952
    %v1117 = vpop.f32.mrb[0].mxu0
    %v1118 = vadd.f32 %v994, %v1117
    %v1119 = vpop.f32.mrb[0].mxu0
    %1120 = vmatprep.mubr.f32.mxu0 0.0
    %1121 = vmatmul.mubr.f32.gmra.mrb[0].mxu0 %v953
    %v1122 = vpop.f32.mrb[0].mxu0
    %v1123 = vadd.f32 %v994, %v1122
    %v1124 = vpop.f32.mrb[0].mxu0
    %1125 = vmatprep.mubr.f32.mxu0 0.0
    %1126 = vmatmul.mubr.f32.gmra.mrb[0].mxu0 %v954
    %v1127 = vpop.f32.mrb[0].mxu0
    %v1128 = vadd.f32 %v994, %v1127
    %v1129 = vpop.f32.mrb[0].mxu0
    %1130 = vmatprep.mubr.f32.mxu0 0.0
    %1131 = vmatmul.mubr.f32.gmra.mrb[0].mxu0 %v955
    %v1132 = vpop.f32.mrb[0].mxu0
    %v1133 = vadd.f32 %v994, %v1132
    %v1134 = vpop.f32.mrb[0].mxu0
    %1135 = vmatprep.mubr.f32.mxu0 0.0
    %1136 = vmatmul.mubr.f32.gmra.mrb[0].mxu0 %v956
    %v1137 = vpop.f32.mrb[0].mxu0
    %v1138 = vadd.f32 %v994, %v1137
    %v1139 = vpop.f32.mrb[0].mxu0
    %1140 = vmatprep.mubr.f32.mxu0 0.0
    %1141 = vmatmul.mubr.f32.gmra.mrb[0].mxu0 %v957
    %v1142 = vpop.f32.mrb[0].mxu0
    %v1143 = vadd.f32 %v994, %v1142
    %v1144 = vpop.f32.mrb[0].mxu0
    %1145 = vmatprep.mubr.f32.mxu0 0.0
    %1146 = vmatmul.mubr.f32.gmra.mrb[0].mxu0 %v958
    %v1147 = vpop.f32.mrb[0].mxu0
    %v1148 = vadd.f32 %v994, %v1147
    %v1149 = vpop.f32.mrb[0].mxu0
    %1150 = vmatprep.mubr.f32.mxu0 0.0
    %1151 = vmatmul.mubr.f32.gmra.mrb[0].mxu0 %v959
    %v1152 = vpop.f32.mrb[0].mxu0
    %v1153 = vadd.f32 %v994, %v1152
    %v1154 = vpop.f32.mrb[0].mxu0
    %1155 = vmatprep.mubr.f32.mxu0 0.0
    %1156 = vmatmul.mubr.f32.gmra.mrb[0].mxu0 %v960
    %v1157 = vpop.f32.mrb[0].mxu0
    %v1158 = vadd.f32 %v994, %v1157
    %v1159 = vpop.f32.mrb[0].mxu0
    %1160 = vmatprep.mubr.f32.mxu0 0.0
    %1161 = vmatmul.mubr.f32.gmra.mrb[0].mxu0 %v961
    %v1162 = vpop.f32.mrb[0].mxu0
    %v1163 = vadd.f32 %v994, %v1162
    %v1164 = vpop.f32.mrb[0].mxu0
    %1165 = vmatprep.mubr.f32.mxu0 0.0
    %1166 = vmatmul.mubr.f32.gmra.mrb[0].mxu0 %v962
    %v1167 = vpop.f32.mrb[0].mxu0
    %v1168 = vadd.f32 %v994, %v1167
    %v1169 = vpop.f32.mrb[0].mxu0
    %1170 = vmatprep.mubr.f32.mxu0 0.0
    %1171 = vmatmul.mubr.f32.gmra.mrb[0].mxu0 %v963
    %v1172 = vpop.f32.mrb[0].mxu0
    %v1173 = vadd.f32 %v994, %v1172
    %v1174 = vpop.f32.mrb[0].mxu0
    %1175 = vmatprep.mubr.f32.mxu0 0.0
    %1176 = vmatmul.mubr.f32.gmra.mrb[0].mxu0 %v964
    %v1177 = vpop.f32.mrb[0].mxu0
    %v1178 = vadd.f32 %v994, %v1177
    %v1179 = vpop.f32.mrb[0].mxu0
    %1180 = vmatprep.mubr.f32.mxu0 0.0
    %1181 = vmatmul.mubr.f32.gmra.mrb[0].mxu0 %v965
    %v1182 = vpop.f32.mrb[0].mxu0
    %v1183 = vadd.f32 %v994, %v1182
    %v1184 = vpop.f32.mrb[0].mxu0
    %1185 = vmatprep.mubr.f32.mxu0 0.0
    %1186 = vmatmul.mubr.f32.gmra.mrb[0].mxu0 %v966
    %v1187 = vpop.f32.mrb[0].mxu0
    %v1188 = vadd.f32 %v994, %v1187
    %v1189 = vpop.f32.mrb[0].mxu0
    %1190 = vmatprep.mubr.f32.mxu0 0.0
    %1191 = vmatmul.mubr.f32.gmra.mrb[0].mxu0 %v967
    %v1192 = vpop.f32.mrb[0].mxu0
    %v1193 = vadd.f32 %v994, %v1192
    %v1194 = vpop.f32.mrb[0].mxu0
    %1195 = vmatprep.mubr.f32.mxu0 0.0
    %1196 = vmatmul.mubr.f32.gmra.mrb[0].mxu0 %v968
    %v1197 = vpop.f32.mrb[0].mxu0
    %v1198 = vadd.f32 %v994, %v1197
    %v1199 = vpop.f32.mrb[0].mxu0
    %1200 = vmatprep.mubr.f32.mxu0 0.0
    %1201 = vmatmul.mubr.f32.gmra.mrb[0].mxu0 %v969
    %v1202 = vpop.f32.mrb[0].mxu0
    %v1203 = vadd.f32 %v994, %v1202
    %v1204 = vpop.f32.mrb[0].mxu0
    %1205 = vmatprep.mubr.f32.mxu0 0.0
    %1206 = vmatmul.mubr.f32.gmra.mrb[0].mxu0 %v970
    %v1207 = vpop.f32.mrb[0].mxu0
    %v1208 = vadd.f32 %v994, %v1207
    %v1209 = vpop.f32.mrb[0].mxu0
    %1210 = vmatprep.mubr.f32.mxu0 0.0
    %1211 = vmatmul.mubr.f32.gmra.mrb[0].mxu0 %v971
    %v1212 = vpop.f32.mrb[0].mxu0
    %v1213 = vadd.f32 %v994, %v1212
    %v1214 = vpop.f32.mrb[0].mxu0
    %1215 = vmatprep.mubr.f32.mxu0 0.0
    %1216 = vmatmul.mubr.f32.gmra.mrb[0].mxu0 %v972
    %v1217 = vpop.f32.mrb[0].mxu0
    %v1218 = vadd.f32 %v994, %v1217
    %v1219 = vpop.f32.mrb[0].mxu0
    %1220 = vdwg.mxu0
    %1221 = vst [vmem:[#allocation11] sm:$0xff] %v1063
    %1222 = vst [vmem:[#allocation11 + $0x8] sm:$0xff] %v1068
    %1223 = vst [vmem:[#allocation11 + $0x10] sm:$0xff] %v1073
    %1224 = vst [vmem:[#allocation11 + $0x18] sm:$0xff] %v1078
    %1225 = vst [vmem:[#allocation11 + $0x20] sm:$0xff] %v1083
    %1226 = vst [vmem:[#allocation11 + $0x28] sm:$0xff] %v1088
    %1227 = vst [vmem:[#allocation11 + $0x30] sm:$0xff] %v1093
    %1228 = vst [vmem:[#allocation11 + $0x38] sm:$0xff] %v1098
    %1229 = vst [vmem:[#allocation11 + $0x40] sm:$0xff] %v1103
    %1230 = vst [vmem:[#allocation11 + $0x48] sm:$0xff] %v1108
    %1231 = vst [vmem:[#allocation11 + $0x50] sm:$0xff] %v1113
    %1232 = vst [vmem:[#allocation11 + $0x58] sm:$0xff] %v1118
    %1233 = vst [vmem:[#allocation11 + $0x60] sm:$0xff] %v1123
    %1234 = vst [vmem:[#allocation11 + $0x68] sm:$0xff] %v1128
    %1235 = vst [vmem:[#allocation11 + $0x70] sm:$0xff] %v1133
    %1236 = vst [vmem:[#allocation11 + $0x78] sm:$0xff] %v1138
    %1237 = vst [vmem:[#allocation11 + $0x80] sm:$0xff] %v1143
    %1238 = vst [vmem:[#allocation11 + $0x88] sm:$0xff] %v1148
    %1239 = vst [vmem:[#allocation11 + $0x90] sm:$0xff] %v1153
    %1240 = vst [vmem:[#allocation11 + $0x98] sm:$0xff] %v1158
    %1241 = vst [vmem:[#allocation11 + $0xa0] sm:$0xff] %v1163
    %1242 = vst [vmem:[#allocation11 + $0xa8] sm:$0xff] %v1168
    %1243 = vst [vmem:[#allocation11 + $0xb0] sm:$0xff] %v1173
    %1244 = vst [vmem:[#allocation11 + $0xb8] sm:$0xff] %v1178
    %1245 = vst [vmem:[#allocation11 + $0xc0] sm:$0xff] %v1183
    %1246 = vst [vmem:[#allocation11 + $0xc8] sm:$0xff] %v1188
    %1247 = vst [vmem:[#allocation11 + $0xd0] sm:$0xff] %v1193
    %1248 = vst [vmem:[#allocation11 + $0xd8] sm:$0xff] %v1198
    %1249 = vst [vmem:[#allocation11 + $0xe0] sm:$0xff] %v1203
    %1250 = vst [vmem:[#allocation11 + $0xe8] sm:$0xff] %v1208
    %1251 = vst [vmem:[#allocation11 + $0xf0] sm:$0xff] %v1213
    %1252 = vst [vmem:[#allocation11 + $0xf8] sm:$0xff] %v1218
    // Predicated region
    $region58: #{tpu_custom_call.1} parent=1 // pred_check
      _
    $region59: #{tpu_custom_call.1} parent=1 // pred_check_branch
      %1254 = sbr.rel (0) target = $region61
    $region60: #{tpu_custom_call.1} parent=1 // pred_region
      %s1256 = ssub.s32 4096, 4096
      %1257 = vsyncadd [#allocation4], %s1256
      %s1258 = sshll.u32 [#allocation11], 4
      %s1259 = int_to_ptr.vmem [resolvable:$true] %s1258
      %1264 = dma.vmem_to_hbm [thread:$0]  %s1259, 4096, %s9, [#allocation4], 128, 128, 8
    $region61: #{tpu_custom_call.1} parent=1 // pred_fallthru
      _
    // Predicated region
    $region62: #{tpu_custom_call.1} parent=1 // pred_check
      _
    $region63: #{tpu_custom_call.1} parent=1 // pred_check_branch
      %1266 = sbr.rel (0) target = $region65
    $region64: #{tpu_custom_call.1} parent=1 // pred_region
      %1267 = dma.done [#allocation4], 4096
    $region65: #{tpu_custom_call.1} parent=1 // pred_fallthru
      _
    %1268 = vsyncpa [#allocation3], 1
    %1269 = vsyncpa [#allocation6], 1
    %1270 = vsyncpa [#allocation9], 1
    %1271 = vsyncpa [#allocation4], 1

// kernel: tpu_custom_call.1
$region0: #{tpu_custom_call.1}
  #allocation0 [shape = 'u32[]', space=smem, size = 0x4, offset = 0x4, fixed_abs, tag = 'smem constant byte address 0x4 - core index']
  #allocation1 [shape = 'u32[144,128]{1,0:T(1,128)}', space=vmem, size = 0x12000, scoped, tag = 'internal scratch']
  %s0 = inlined_call_operand.hbm [shape: f32[256,128], index: 0, kind: input, shape index: {}]
  %s1 = inlined_call_operand.hbm [shape: f32[128,128], index: 1, kind: input, shape index: {}]
  %s2 = inlined_call_operand.vmem [shape: f32[1,128], index: 2, kind: input, shape index: {}]
  %s3 = inlined_call_operand.hbm [shape: f32[128,128], index: 3, kind: input, shape index: {}]
  %s4 = inlined_call_operand.vmem [shape: f32[1,128], index: 4, kind: input, shape index: {}]
  %s5 = inlined_call_operand.hbm [shape: f32[128,128], index: 5, kind: input, shape index: {}]
  %s6 = inlined_call_operand.vmem [shape: f32[1,128], index: 6, kind: input, shape index: {}]
  %s7 = inlined_call_operand.hbm [shape: f32[128,128], index: 7, kind: input, shape index: {}]
  %s8 = inlined_call_operand.vmem [shape: f32[1,128], index: 8, kind: input, shape index: {}]
  %s9 = inlined_call_operand.hbm [shape: f32[256,128], index: 9, kind: output, shape index: {}]
  %s10 = sld [smem:[#allocation0]]
  $region66: #{tpu_custom_call.1} parent=0
    _
  %s12 = ssub.s32 1, %s10
  %s13 = scalar_select 0, %s12, %s10
  $region1: #{tpu_custom_call.1} parent=0
    #allocation2 [shape = 'u8[131072]{0}', space=vmem, size = 0x20000, scoped, tag = 'input window, operand 0, single buffered']
    #allocation3 [shape = 's32[1]{0}', space=sflag, size = 0x4, scoped, tag = 'scoped memory for tpu_custom_call.1']
    #allocation4 [shape = 's32[1]{0}', space=sflag, size = 0x4, scoped, tag = 'scoped memory for tpu_custom_call.1']
    #allocation5 [shape = 'u8[65536]{0}', space=vmem, size = 0x10000, scoped, tag = 'input window, operand 1, single buffered']
    #allocation6 [shape = 's32[1]{0}', space=sflag, size = 0x4, scoped, tag = 'scoped memory for tpu_custom_call.1']
    #allocation7 [shape = 'u8[65536]{0}', space=vmem, size = 0x10000, scoped, tag = 'input window, operand 3, single buffered']
    #allocation8 [shape = 'u8[65536]{0}', space=vmem, size = 0x10000, scoped, tag = 'input window, operand 5, single buffered']
    #allocation9 [shape = 's32[1]{0}', space=sflag, size = 0x4, scoped, tag = 'scoped memory for tpu_custom_call.1']
    #allocation10 [shape = 'u8[65536]{0}', space=vmem, size = 0x10000, scoped, tag = 'input window, operand 7, single buffered']
    #allocation11 [shape = 'u8[131072]{0}', space=vmem, size = 0x20000, scoped, tag = 'output window, operand 0, single buffered']
    %14 = vsyncpa [#allocation3], 0
    %15 = vsyncpa [#allocation6], 0
    %16 = vsyncpa [#allocation9], 0
    %17 = vsyncpa [#allocation4], 0
    // Predicated region
    $region2: #{tpu_custom_call.1} parent=1 // pred_check
      _
    $region3: #{tpu_custom_call.1} parent=1 // pred_check_branch
      %19 = sbr.rel (0) target = $region5
    $region4: #{tpu_custom_call.1} parent=1 // pred_region
      %s21 = ssub.s32 4096, 4096
      %22 = vsyncadd [#allocation3], %s21
      %s23 = sshll.u32 [#allocation2], 4
      %s24 = int_to_ptr.vmem [resolvable:$true] %s23
      %29 = dma.hbm_to_vmem [thread:$0]  %s0, 4096, %s24, [#allocation3], 128, 128, 8
    $region5: #{tpu_custom_call.1} parent=1 // pred_fallthru
      _
    // Predicated region
    $region6: #{tpu_custom_call.1} parent=1 // pred_check
      _
    $region7: #{tpu_custom_call.1} parent=1 // pred_check_branch
      %31 = sbr.rel (0) target = $region9
    $region8: #{tpu_custom_call.1} parent=1 // pred_region
      %s33 = ssub.s32 2048, 2048
      %34 = vsyncadd [#allocation6], %s33
      %s35 = sshll.u32 [#allocation5], 4
      %s36 = int_to_ptr.vmem [resolvable:$true] %s35
      %41 = dma.hbm_to_vmem [thread:$0]  %s1, 2048, %s36, [#allocation6], 128, 128, 8
    $region9: #{tpu_custom_call.1} parent=1 // pred_fallthru
      _
    // Predicated region
    $region10: #{tpu_custom_call.1} parent=1 // pred_check
      _
    $region11: #{tpu_custom_call.1} parent=1 // pred_check_branch
      %43 = sbr.rel (0) target = $region13
    $region12: #{tpu_custom_call.1} parent=1 // pred_region
      _
    $region13: #{tpu_custom_call.1} parent=1 // pred_fallthru
      _
    // Predicated region
    $region14: #{tpu_custom_call.1} parent=1 // pred_check
      _
    $region15: #{tpu_custom_call.1} parent=1 // pred_check_branch
      %45 = sbr.rel (0) target = $region17
    $region16: #{tpu_custom_call.1} parent=1 // pred_region
      %s47 = ssub.s32 2048, 2048
      %48 = vsyncadd [#allocation6], %s47
      %s49 = sshll.u32 [#allocation7], 4
      %s50 = int_to_ptr.vmem [resolvable:$true] %s49
      %55 = dma.hbm_to_vmem [thread:$0]  %s3, 2048, %s50, [#allocation6], 128, 128, 8
    $region17: #{tpu_custom_call.1} parent=1 // pred_fallthru
      _
    // Predicated region
    $region18: #{tpu_custom_call.1} parent=1 // pred_check
      _
    $region19: #{tpu_custom_call.1} parent=1 // pred_check_branch
      %57 = sbr.rel (0) target = $region21
    $region20: #{tpu_custom_call.1} parent=1 // pred_region
      _
    $region21: #{tpu_custom_call.1} parent=1 // pred_fallthru
      _
    // Predicated region
    $region22: #{tpu_custom_call.1} parent=1 // pred_check
      _
    $region23: #{tpu_custom_call.1} parent=1 // pred_check_branch
      %59 = sbr.rel (0) target = $region25
    $region24: #{tpu_custom_call.1} parent=1 // pred_region
      %s61 = ssub.s32 2048, 2048
      %62 = vsyncadd [#allocation9], %s61
      %s63 = sshll.u32 [#allocation8], 4
      %s64 = int_to_ptr.vmem [resolvable:$true] %s63
      %69 = dma.hbm_to_vmem [thread:$0]  %s5, 2048, %s64, [#allocation9], 128, 128, 8
    $region25: #{tpu_custom_call.1} parent=1 // pred_fallthru
      _
    // Predicated region
    $region26: #{tpu_custom_call.1} parent=1 // pred_check
      _
    $region27: #{tpu_custom_call.1} parent=1 // pred_check_branch
      %71 = sbr.rel (0) target = $region29
    $region28: #{tpu_custom_call.1} parent=1 // pred_region
      _
    $region29: #{tpu_custom_call.1} parent=1 // pred_fallthru
      _
    // Predicated region
    $region30: #{tpu_custom_call.1} parent=1 // pred_check
      _
    $region31: #{tpu_custom_call.1} parent=1 // pred_check_branch
      %73 = sbr.rel (0) target = $region33
    $region32: #{tpu_custom_call.1} parent=1 // pred_region
      %s75 = ssub.s32 2048, 2048
      %76 = vsyncadd [#allocation9], %s75
      %s77 = sshll.u32 [#allocation10], 4
      %s78 = int_to_ptr.vmem [resolvable:$true] %s77
      %83 = dma.hbm_to_vmem [thread:$0]  %s7, 2048, %s78, [#allocation9], 128, 128, 8
    $region33: #{tpu_custom_call.1} parent=1 // pred_fallthru
      _
    // Predicated region
    $region34: #{tpu_custom_call.1} parent=1 // pred_check
      _
    $region35: #{tpu_custom_call.1} parent=1 // pred_check_branch
      %85 = sbr.rel (0) target = $region37
    $region36: #{tpu_custom_call.1} parent=1 // pred_region
      _
    $region37: #{tpu_custom_call.1} parent=1 // pred_fallthru
      _
    // Predicated region
    $region38: #{tpu_custom_call.1} parent=1 // pred_check
      _
    $region39: #{tpu_custom_call.1} parent=1 // pred_check_branch
      %87 = sbr.rel (0) target = $region41
    $region40: #{tpu_custom_call.1} parent=1 // pred_region
      %88 = dma.done [#allocation3], 4096
    $region41: #{tpu_custom_call.1} parent=1 // pred_fallthru
      _
    // Predicated region
    $region42: #{tpu_custom_call.1} parent=1 // pred_check
      _
    $region43: #{tpu_custom_call.1} parent=1 // pred_check_branch
      %90 = sbr.rel (0) target = $region45
    $region44: #{tpu_custom_call.1} parent=1 // pred_region
      %91 = dma.done [#allocation6], 2048
    $region45: #{tpu_custom_call.1} parent=1 // pred_fallthru
      _
    // Predicated region
    $region46: #{tpu_custom_call.1} parent=1 // pred_check
      _
    $region47: #{tpu_custom_call.1} parent=1 // pred_check_branch
      %93 = sbr.rel (0) target = $region49
    $region48: #{tpu_custom_call.1} parent=1 // pred_region
      %94 = dma.done [#allocation6], 2048
    $region49: #{tpu_custom_call.1} parent=1 // pred_fallthru
      _
    // Predicated region
    $region50: #{tpu_custom_call.1} parent=1 // pred_check
      _
    $region51: #{tpu_custom_call.1} parent=1 // pred_check_branch
      %96 = sbr.rel (0) target = $region53
    $region52: #{tpu_custom_call.1} parent=1 // pred_region
      %97 = dma.done [#allocation9], 2048
    $region53: #{tpu_custom_call.1} parent=1 // pred_fallthru
      _
    // Predicated region
    $region54: #{tpu_custom_call.1} parent=1 // pred_check
      _
    $region55: #{tpu_custom_call.1} parent=1 // pred_check_branch
      %99 = sbr.rel (0) target = $region57
    $region56: #{tpu_custom_call.1} parent=1 // pred_region
      %100 = dma.done [#allocation9], 2048
    $region57: #{tpu_custom_call.1} parent=1 // pred_fallthru
      _
    %v101 = vld [vmem:[#allocation2] sm:$0xff]
    %v102 = vld [vmem:[#allocation2 + $0x8] sm:$0xff]
    %v103 = vld [vmem:[#allocation2 + $0x10] sm:$0xff]
    %v104 = vld [vmem:[#allocation2 + $0x18] sm:$0xff]
    %v105 = vld [vmem:[#allocation2 + $0x20] sm:$0xff]
    %v106 = vld [vmem:[#allocation2 + $0x28] sm:$0xff]
    %v107 = vld [vmem:[#allocation2 + $0x30] sm:$0xff]
    %v108 = vld [vmem:[#allocation2 + $0x38] sm:$0xff]
    %v109 = vld [vmem:[#allocation2 + $0x40] sm:$0xff]
    %v110 = vld [vmem:[#allocation2 + $0x48] sm:$0xff]
    %v111 = vld [vmem:[#allocation2 + $0x50] sm:$0xff]
    %v112 = vld [vmem:[#allocation2 + $0x58] sm:$0xff]
    %v113 = vld [vmem:[#allocation2 + $0x60] sm:$0xff]
    %v114 = vld [vmem:[#allocation2 + $0x68] sm:$0xff]
    %v115 = vld [vmem:[#allocation2 + $0x70] sm:$0xff]
    %v116 = vld [vmem:[#allocation2 + $0x78] sm:$0xff]
    %v117 = vld [vmem:[#allocation2 + $0x80] sm:$0xff]
    %v118 = vld [vmem:[#allocation2 + $0x88] sm:$0xff]
    %v119 = vld [vmem:[#allocation2 + $0x90] sm:$0xff]
    %v120 = vld [vmem:[#allocation2 + $0x98] sm:$0xff]
    %v121 = vld [vmem:[#allocation2 + $0xa0] sm:$0xff]
    %v122 = vld [vmem:[#allocation2 + $0xa8] sm:$0xff]
    %v123 = vld [vmem:[#allocation2 + $0xb0] sm:$0xff]
    %v124 = vld [vmem:[#allocation2 + $0xb8] sm:$0xff]
    %v125 = vld [vmem:[#allocation2 + $0xc0] sm:$0xff]
    %v126 = vld [vmem:[#allocation2 + $0xc8] sm:$0xff]
    %v127 = vld [vmem:[#allocation2 + $0xd0] sm:$0xff]
    %v128 = vld [vmem:[#allocation2 + $0xd8] sm:$0xff]
    %v129 = vld [vmem:[#allocation2 + $0xe0] sm:$0xff]
    %v130 = vld [vmem:[#allocation2 + $0xe8] sm:$0xff]
    %v131 = vld [vmem:[#allocation2 + $0xf0] sm:$0xff]
    %v132 = vld [vmem:[#allocation2 + $0xf8] sm:$0xff]
    %v133 = vld [vmem:[#allocation5] sm:$0xff]
    %v134 = vld [vmem:[#allocation5 + $0x8] sm:$0xff]
    %v135 = vld [vmem:[#allocation5 + $0x10] sm:$0xff]
    %v136 = vld [vmem:[#allocation5 + $0x18] sm:$0xff]
    %v137 = vld [vmem:[#allocation5 + $0x20] sm:$0xff]
    %v138 = vld [vmem:[#allocation5 + $0x28] sm:$0xff]
    %v139 = vld [vmem:[#allocation5 + $0x30] sm:$0xff]
    %v140 = vld [vmem:[#allocation5 + $0x38] sm:$0xff]
    %v141 = vld [vmem:[#allocation5 + $0x40] sm:$0xff]
    %v142 = vld [vmem:[#allocation5 + $0x48] sm:$0xff]
    %v143 = vld [vmem:[#allocation5 + $0x50] sm:$0xff]
    %v144 = vld [vmem:[#allocation5 + $0x58] sm:$0xff]
    %v145 = vld [vmem:[#allocation5 + $0x60] sm:$0xff]
    %v146 = vld [vmem:[#allocation5 + $0x68] sm:$0xff]
    %v147 = vld [vmem:[#allocation5 + $0x70] sm:$0xff]
    %v148 = vld [vmem:[#allocation5 + $0x78] sm:$0xff]
    %v149 = vld [vmem:[%s2] sm:$0x1]
    %v151 = vlaneseq
    %v152 = vshrl.u32 %v151, 7
    %v153 = vsub.s32 0, %v152
    %v154 = vrot.slane %v149, %v153
    %156 = vmatprep.subr.mxu0 0.0
    %157 = vmatpush1.msra.mxu0 %v133
    %158 = vmatprep.subr.mxu0 0.0
    %159 = vmatpush1.msra.mxu0 %v134
    %160 = vmatprep.subr.mxu0 0.0
    %161 = vmatpush1.msra.mxu0 %v135
    %162 = vmatprep.subr.mxu0 0.0
    %163 = vmatpush1.msra.mxu0 %v136
    %164 = vmatprep.subr.mxu0 0.0
    %165 = vmatpush1.msra.mxu0 %v137
    %166 = vmatprep.subr.mxu0 0.0
    %167 = vmatpush1.msra.mxu0 %v138
    %168 = vmatprep.subr.mxu0 0.0
    %169 = vmatpush1.msra.mxu0 %v139
    %170 = vmatprep.subr.mxu0 0.0
    %171 = vmatpush1.msra.mxu0 %v140
    %172 = vmatprep.subr.mxu0 0.0
    %173 = vmatpush1.msra.mxu0 %v141
    %174 = vmatprep.subr.mxu0 0.0
    %175 = vmatpush1.msra.mxu0 %v142
    %176 = vmatprep.subr.mxu0 0.0
    %177 = vmatpush1.msra.mxu0 %v143
    %178 = vmatprep.subr.mxu0 0.0
    %179 = vmatpush1.msra.mxu0 %v144
    %180 = vmatprep.subr.mxu0 0.0
    %181 = vmatpush1.msra.mxu0 %v145
    %182 = vmatprep.subr.mxu0 0.0
    %183 = vmatpush1.msra.mxu0 %v146
    %184 = vmatprep.subr.mxu0 0.0
    %185 = vmatpush1.msra.mxu0 %v147
    %186 = vmatprep.subr.mxu0 0.0
    %187 = vmatpush1.msra.mxu0 %v148
    %188 = vmatprep.subr.mxu0 0.0
    %189 = vmatpush1.msra.mxu0 0.0
    %190 = vmatprep.subr.mxu0 0.0
    %191 = vmatpush1.msra.mxu0 0.0
    %192 = vmatprep.subr.mxu0 0.0
    %193 = vmatpush1.msra.mxu0 0.0
    %194 = vmatprep.subr.mxu0 0.0
    %195 = vmatpush1.msra.mxu0 0.0
    %196 = vmatprep.subr.mxu0 0.0
    %197 = vmatpush1.msra.mxu0 0.0
    %198 = vmatprep.subr.mxu0 0.0
    %199 = vmatpush1.msra.mxu0 0.0
    %200 = vmatprep.subr.mxu0 0.0
    %201 = vmatpush1.msra.mxu0 0.0
    %202 = vmatprep.subr.mxu0 0.0
    %203 = vmatpush1.msra.mxu0 0.0
    %204 = vmatprep.subr.mxu0 0.0
    %205 = vmatpush1.msra.mxu0 0.0
    %206 = vmatprep.subr.mxu0 0.0
    %207 = vmatpush1.msra.mxu0 0.0
    %208 = vmatprep.subr.mxu0 0.0
    %209 = vmatpush1.msra.mxu0 0.0
    %210 = vmatprep.subr.mxu0 0.0
    %211 = vmatpush1.msra.mxu0 0.0
    %212 = vmatprep.subr.mxu0 0.0
    %213 = vmatpush1.msra.mxu0 0.0
    %214 = vmatprep.subr.mxu0 0.0
    %215 = vmatpush1.msra.mxu0 0.0
    %216 = vmatprep.subr.mxu0 0.0
    %217 = vmatpush1.msra.mxu0 0.0
    %218 = vmatprep.subr.mxu0 0.0
    %219 = vmatpush1.msra.mxu0 0.0
    %220 = vmatprep.mubr.f32.mxu0 0.0
    %221 = vmatmul.mubr.f32.gmra.mrb[0].mxu0 %v101
    %v222 = vpop.f32.mrb[0].mxu0
    %v223 = vadd.f32 %v154, %v222
    %v224 = vpop.f32.mrb[0].mxu0
    %225 = vmatprep.mubr.f32.mxu0 0.0
    %226 = vmatmul.mubr.f32.gmra.mrb[0].mxu0 %v102
    %v227 = vpop.f32.mrb[0].mxu0
    %v228 = vadd.f32 %v154, %v227
    %v229 = vpop.f32.mrb[0].mxu0
    %230 = vmatprep.mubr.f32.mxu0 0.0
    %231 = vmatmul.mubr.f32.gmra.mrb[0].mxu0 %v103
    %v232 = vpop.f32.mrb[0].mxu0
    %v233 = vadd.f32 %v154, %v232
    %v234 = vpop.f32.mrb[0].mxu0
    %235 = vmatprep.mubr.f32.mxu0 0.0
    %236 = vmatmul.mubr.f32.gmra.mrb[0].mxu0 %v104
    %v237 = vpop.f32.mrb[0].mxu0
    %v238 = vadd.f32 %v154, %v237
    %v239 = vpop.f32.mrb[0].mxu0
    %240 = vmatprep.mubr.f32.mxu0 0.0
    %241 = vmatmul.mubr.f32.gmra.mrb[0].mxu0 %v105
    %v242 = vpop.f32.mrb[0].mxu0
    %v243 = vadd.f32 %v154, %v242
    %v244 = vpop.f32.mrb[0].mxu0
    %245 = vmatprep.mubr.f32.mxu0 0.0
    %246 = vmatmul.mubr.f32.gmra.mrb[0].mxu0 %v106
    %v247 = vpop.f32.mrb[0].mxu0
    %v248 = vadd.f32 %v154, %v247
    %v249 = vpop.f32.mrb[0].mxu0
    %250 = vmatprep.mubr.f32.mxu0 0.0
    %251 = vmatmul.mubr.f32.gmra.mrb[0].mxu0 %v107
    %v252 = vpop.f32.mrb[0].mxu0
    %v253 = vadd.f32 %v154, %v252
    %v254 = vpop.f32.mrb[0].mxu0
    %255 = vmatprep.mubr.f32.mxu0 0.0
    %256 = vmatmul.mubr.f32.gmra.mrb[0].mxu0 %v108
    %v257 = vpop.f32.mrb[0].mxu0
    %v258 = vadd.f32 %v154, %v257
    %v259 = vpop.f32.mrb[0].mxu0
    %260 = vmatprep.mubr.f32.mxu0 0.0
    %261 = vmatmul.mubr.f32.gmra.mrb[0].mxu0 %v109
    %v262 = vpop.f32.mrb[0].mxu0
    %v263 = vadd.f32 %v154, %v262
    %v264 = vpop.f32.mrb[0].mxu0
    %265 = vmatprep.mubr.f32.mxu0 0.0
    %266 = vmatmul.mubr.f32.gmra.mrb[0].mxu0 %v110
    %v267 = vpop.f32.mrb[0].mxu0
    %v268 = vadd.f32 %v154, %v267
    %v269 = vpop.f32.mrb[0].mxu0
    %270 = vmatprep.mubr.f32.mxu0 0.0
    %271 = vmatmul.mubr.f32.gmra.mrb[0].mxu0 %v111
    %v272 = vpop.f32.mrb[0].mxu0
    %v273 = vadd.f32 %v154, %v272
    %v274 = vpop.f32.mrb[0].mxu0
    %275 = vmatprep.mubr.f32.mxu0 0.0
    %276 = vmatmul.mubr.f32.gmra.mrb[0].mxu0 %v112
    %v277 = vpop.f32.mrb[0].mxu0
    %v278 = vadd.f32 %v154, %v277
    %v279 = vpop.f32.mrb[0].mxu0
    %280 = vmatprep.mubr.f32.mxu0 0.0
    %281 = vmatmul.mubr.f32.gmra.mrb[0].mxu0 %v113
    %v282 = vpop.f32.mrb[0].mxu0
    %v283 = vadd.f32 %v154, %v282
    %v284 = vpop.f32.mrb[0].mxu0
    %285 = vmatprep.mubr.f32.mxu0 0.0
    %286 = vmatmul.mubr.f32.gmra.mrb[0].mxu0 %v114
    %v287 = vpop.f32.mrb[0].mxu0
    %v288 = vadd.f32 %v154, %v287
    %v289 = vpop.f32.mrb[0].mxu0
    %290 = vmatprep.mubr.f32.mxu0 0.0
    %291 = vmatmul.mubr.f32.gmra.mrb[0].mxu0 %v115
    %v292 = vpop.f32.mrb[0].mxu0
    %v293 = vadd.f32 %v154, %v292
    %v294 = vpop.f32.mrb[0].mxu0
    %295 = vmatprep.mubr.f32.mxu0 0.0
    %296 = vmatmul.mubr.f32.gmra.mrb[0].mxu0 %v116
    %v297 = vpop.f32.mrb[0].mxu0
    %v298 = vadd.f32 %v154, %v297
    %v299 = vpop.f32.mrb[0].mxu0
    %300 = vmatprep.mubr.f32.mxu0 0.0
    %301 = vmatmul.mubr.f32.gmra.mrb[0].mxu0 %v117
    %v302 = vpop.f32.mrb[0].mxu0
    %v303 = vadd.f32 %v154, %v302
    %v304 = vpop.f32.mrb[0].mxu0
    %305 = vmatprep.mubr.f32.mxu0 0.0
    %306 = vmatmul.mubr.f32.gmra.mrb[0].mxu0 %v118
    %v307 = vpop.f32.mrb[0].mxu0
    %v308 = vadd.f32 %v154, %v307
    %v309 = vpop.f32.mrb[0].mxu0
    %310 = vmatprep.mubr.f32.mxu0 0.0
    %311 = vmatmul.mubr.f32.gmra.mrb[0].mxu0 %v119
    %v312 = vpop.f32.mrb[0].mxu0
    %v313 = vadd.f32 %v154, %v312
    %v314 = vpop.f32.mrb[0].mxu0
    %315 = vmatprep.mubr.f32.mxu0 0.0
    %316 = vmatmul.mubr.f32.gmra.mrb[0].mxu0 %v120
    %v317 = vpop.f32.mrb[0].mxu0
    %v318 = vadd.f32 %v154, %v317
    %v319 = vpop.f32.mrb[0].mxu0
    %320 = vmatprep.mubr.f32.mxu0 0.0
    %321 = vmatmul.mubr.f32.gmra.mrb[0].mxu0 %v121
    %v322 = vpop.f32.mrb[0].mxu0
    %v323 = vadd.f32 %v154, %v322
    %v324 = vpop.f32.mrb[0].mxu0
    %325 = vmatprep.mubr.f32.mxu0 0.0
    %326 = vmatmul.mubr.f32.gmra.mrb[0].mxu0 %v122
    %v327 = vpop.f32.mrb[0].mxu0
    %v328 = vadd.f32 %v154, %v327
    %v329 = vpop.f32.mrb[0].mxu0
    %330 = vmatprep.mubr.f32.mxu0 0.0
    %331 = vmatmul.mubr.f32.gmra.mrb[0].mxu0 %v123
    %v332 = vpop.f32.mrb[0].mxu0
    %v333 = vadd.f32 %v154, %v332
    %v334 = vpop.f32.mrb[0].mxu0
    %335 = vmatprep.mubr.f32.mxu0 0.0
    %336 = vmatmul.mubr.f32.gmra.mrb[0].mxu0 %v124
    %v337 = vpop.f32.mrb[0].mxu0
    %v338 = vadd.f32 %v154, %v337
    %v339 = vpop.f32.mrb[0].mxu0
    %340 = vmatprep.mubr.f32.mxu0 0.0
    %341 = vmatmul.mubr.f32.gmra.mrb[0].mxu0 %v125
    %v342 = vpop.f32.mrb[0].mxu0
    %v343 = vadd.f32 %v154, %v342
    %v344 = vpop.f32.mrb[0].mxu0
    %345 = vmatprep.mubr.f32.mxu0 0.0
    %346 = vmatmul.mubr.f32.gmra.mrb[0].mxu0 %v126
    %v347 = vpop.f32.mrb[0].mxu0
    %v348 = vadd.f32 %v154, %v347
    %v349 = vpop.f32.mrb[0].mxu0
    %350 = vmatprep.mubr.f32.mxu0 0.0
    %351 = vmatmul.mubr.f32.gmra.mrb[0].mxu0 %v127
    %v352 = vpop.f32.mrb[0].mxu0
    %v353 = vadd.f32 %v154, %v352
    %v354 = vpop.f32.mrb[0].mxu0
    %355 = vmatprep.mubr.f32.mxu0 0.0
    %356 = vmatmul.mubr.f32.gmra.mrb[0].mxu0 %v128
    %v357 = vpop.f32.mrb[0].mxu0
    %v358 = vadd.f32 %v154, %v357
    %v359 = vpop.f32.mrb[0].mxu0
    %360 = vmatprep.mubr.f32.mxu0 0.0
    %361 = vmatmul.mubr.f32.gmra.mrb[0].mxu0 %v129
    %v362 = vpop.f32.mrb[0].mxu0
    %v363 = vadd.f32 %v154, %v362
    %v364 = vpop.f32.mrb[0].mxu0
    %365 = vmatprep.mubr.f32.mxu0 0.0
    %366 = vmatmul.mubr.f32.gmra.mrb[0].mxu0 %v130
    %v367 = vpop.f32.mrb[0].mxu0
    %v368 = vadd.f32 %v154, %v367
    %v369 = vpop.f32.mrb[0].mxu0
    %370 = vmatprep.mubr.f32.mxu0 0.0
    %371 = vmatmul.mubr.f32.gmra.mrb[0].mxu0 %v131
    %v372 = vpop.f32.mrb[0].mxu0
    %v373 = vadd.f32 %v154, %v372
    %v374 = vpop.f32.mrb[0].mxu0
    %375 = vmatprep.mubr.f32.mxu0 0.0
    %376 = vmatmul.mubr.f32.gmra.mrb[0].mxu0 %v132
    %v377 = vpop.f32.mrb[0].mxu0
    %v378 = vadd.f32 %v154, %v377
    %v379 = vpop.f32.mrb[0].mxu0
    %380 = vdwg.mxu0
    %v381 = vmax.f32 %v223, 0.0
    %v382 = vmax.f32 %v228, 0.0
    %v383 = vmax.f32 %v233, 0.0
    %v384 = vmax.f32 %v238, 0.0
    %v385 = vmax.f32 %v243, 0.0
    %v386 = vmax.f32 %v248, 0.0
    %v387 = vmax.f32 %v253, 0.0
    %v388 = vmax.f32 %v258, 0.0
    %v389 = vmax.f32 %v263, 0.0
    %v390 = vmax.f32 %v268, 0.0
    %v391 = vmax.f32 %v273, 0.0
    %v392 = vmax.f32 %v278, 0.0
    %v393 = vmax.f32 %v283, 0.0
    %v394 = vmax.f32 %v288, 0.0
    %v395 = vmax.f32 %v293, 0.0
    %v396 = vmax.f32 %v298, 0.0
    %v397 = vmax.f32 %v303, 0.0
    %v398 = vmax.f32 %v308, 0.0
    %v399 = vmax.f32 %v313, 0.0
    %v400 = vmax.f32 %v318, 0.0
    %v401 = vmax.f32 %v323, 0.0
    %v402 = vmax.f32 %v328, 0.0
    %v403 = vmax.f32 %v333, 0.0
    %v404 = vmax.f32 %v338, 0.0
    %v405 = vmax.f32 %v343, 0.0
    %v406 = vmax.f32 %v348, 0.0
    %v407 = vmax.f32 %v353, 0.0
    %v408 = vmax.f32 %v358, 0.0
    %v409 = vmax.f32 %v363, 0.0
    %v410 = vmax.f32 %v368, 0.0
    %v411 = vmax.f32 %v373, 0.0
    %v412 = vmax.f32 %v378, 0.0
    %v413 = vld [vmem:[#allocation7] sm:$0xff]
    %v414 = vld [vmem:[#allocation7 + $0x8] sm:$0xff]
    %v415 = vld [vmem:[#allocation7 + $0x10] sm:$0xff]
    %v416 = vld [vmem:[#allocation7 + $0x18] sm:$0xff]
    %v417 = vld [vmem:[#allocation7 + $0x20] sm:$0xff]
    %v418 = vld [vmem:[#allocation7 + $0x28] sm:$0xff]
    %v419 = vld [vmem:[#allocation7 + $0x30] sm:$0xff]
    %v420 = vld [vmem:[#allocation7 + $0x38] sm:$0xff]
    %v421 = vld [vmem:[#allocation7 + $0x40] sm:$0xff]
    %v422 = vld [vmem:[#allocation7 + $0x48] sm:$0xff]
    %v423 = vld [vmem:[#allocation7 + $0x50] sm:$0xff]
    %v424 = vld [vmem:[#allocation7 + $0x58] sm:$0xff]
    %v425 = vld [vmem:[#allocation7 + $0x60] sm:$0xff]
    %v426 = vld [vmem:[#allocation7 + $0x68] sm:$0xff]
    %v427 = vld [vmem:[#allocation7 + $0x70] sm:$0xff]
    %v428 = vld [vmem:[#allocation7 + $0x78] sm:$0xff]
    %v429 = vld [vmem:[%s4] sm:$0x1]
    %v431 = vlaneseq
    %v432 = vshrl.u32 %v431, 7
    %v433 = vsub.s32 0, %v432
    %v434 = vrot.slane %v429, %v433
    %436 = vmatprep.subr.mxu0 0.0
    %437 = vmatpush1.msra.mxu0 %v413
    %438 = vmatprep.subr.mxu0 0.0
    %439 = vmatpush1.msra.mxu0 %v414
    %440 = vmatprep.subr.mxu0 0.0
    %441 = vmatpush1.msra.mxu0 %v415
    %442 = vmatprep.subr.mxu0 0.0
    %443 = vmatpush1.msra.mxu0 %v416
    %444 = vmatprep.subr.mxu0 0.0
    %445 = vmatpush1.msra.mxu0 %v417
    %446 = vmatprep.subr.mxu0 0.0
    %447 = vmatpush1.msra.mxu0 %v418
    %448 = vmatprep.subr.mxu0 0.0
    %449 = vmatpush1.msra.mxu0 %v419
    %450 = vmatprep.subr.mxu0 0.0
    %451 = vmatpush1.msra.mxu0 %v420
    %452 = vmatprep.subr.mxu0 0.0
    %453 = vmatpush1.msra.mxu0 %v421
    %454 = vmatprep.subr.mxu0 0.0
    %455 = vmatpush1.msra.mxu0 %v422
    %456 = vmatprep.subr.mxu0 0.0
    %457 = vmatpush1.msra.mxu0 %v423
    %458 = vmatprep.subr.mxu0 0.0
    %459 = vmatpush1.msra.mxu0 %v424
    %460 = vmatprep.subr.mxu0 0.0
    %461 = vmatpush1.msra.mxu0 %v425
    %462 = vmatprep.subr.mxu0 0.0
    %463 = vmatpush1.msra.mxu0 %v426
    %464 = vmatprep.subr.mxu0 0.0
    %465 = vmatpush1.msra.mxu0 %v427
    %466 = vmatprep.subr.mxu0 0.0
    %467 = vmatpush1.msra.mxu0 %v428
    %468 = vmatprep.subr.mxu0 0.0
    %469 = vmatpush1.msra.mxu0 0.0
    %470 = vmatprep.subr.mxu0 0.0
    %471 = vmatpush1.msra.mxu0 0.0
    %472 = vmatprep.subr.mxu0 0.0
    %473 = vmatpush1.msra.mxu0 0.0
    %474 = vmatprep.subr.mxu0 0.0
    %475 = vmatpush1.msra.mxu0 0.0
    %476 = vmatprep.subr.mxu0 0.0
    %477 = vmatpush1.msra.mxu0 0.0
    %478 = vmatprep.subr.mxu0 0.0
    %479 = vmatpush1.msra.mxu0 0.0
    %480 = vmatprep.subr.mxu0 0.0
    %481 = vmatpush1.msra.mxu0 0.0
    %482 = vmatprep.subr.mxu0 0.0
    %483 = vmatpush1.msra.mxu0 0.0
    %484 = vmatprep.subr.mxu0 0.0
    %485 = vmatpush1.msra.mxu0 0.0
    %486 = vmatprep.subr.mxu0 0.0
    %487 = vmatpush1.msra.mxu0 0.0
    %488 = vmatprep.subr.mxu0 0.0
    %489 = vmatpush1.msra.mxu0 0.0
    %490 = vmatprep.subr.mxu0 0.0
    %491 = vmatpush1.msra.mxu0 0.0
    %492 = vmatprep.subr.mxu0 0.0
    %493 = vmatpush1.msra.mxu0 0.0
    %494 = vmatprep.subr.mxu0 0.0
    %495 = vmatpush1.msra.mxu0 0.0
    %496 = vmatprep.subr.mxu0 0.0
    %497 = vmatpush1.msra.mxu0 0.0
    %498 = vmatprep.subr.mxu0 0.0
    %499 = vmatpush1.msra.mxu0 0.0
    %500 = vmatprep.mubr.f32.mxu0 0.0
    %501 = vmatmul.mubr.f32.gmra.mrb[0].mxu0 %v381
    %v502 = vpop.f32.mrb[0].mxu0
    %v503 = vadd.f32 %v434, %v502
    %v504 = vpop.f32.mrb[0].mxu0
    %505 = vmatprep.mubr.f32.mxu0 0.0
    %506 = vmatmul.mubr.f32.gmra.mrb[0].mxu0 %v382
    %v507 = vpop.f32.mrb[0].mxu0
    %v508 = vadd.f32 %v434, %v507
    %v509 = vpop.f32.mrb[0].mxu0
    %510 = vmatprep.mubr.f32.mxu0 0.0
    %511 = vmatmul.mubr.f32.gmra.mrb[0].mxu0 %v383
    %v512 = vpop.f32.mrb[0].mxu0
    %v513 = vadd.f32 %v434, %v512
    %v514 = vpop.f32.mrb[0].mxu0
    %515 = vmatprep.mubr.f32.mxu0 0.0
    %516 = vmatmul.mubr.f32.gmra.mrb[0].mxu0 %v384
    %v517 = vpop.f32.mrb[0].mxu0
    %v518 = vadd.f32 %v434, %v517
    %v519 = vpop.f32.mrb[0].mxu0
    %520 = vmatprep.mubr.f32.mxu0 0.0
    %521 = vmatmul.mubr.f32.gmra.mrb[0].mxu0 %v385
    %v522 = vpop.f32.mrb[0].mxu0
    %v523 = vadd.f32 %v434, %v522
    %v524 = vpop.f32.mrb[0].mxu0
    %525 = vmatprep.mubr.f32.mxu0 0.0
    %526 = vmatmul.mubr.f32.gmra.mrb[0].mxu0 %v386
    %v527 = vpop.f32.mrb[0].mxu0
    %v528 = vadd.f32 %v434, %v527
    %v529 = vpop.f32.mrb[0].mxu0
    %530 = vmatprep.mubr.f32.mxu0 0.0
    %531 = vmatmul.mubr.f32.gmra.mrb[0].mxu0 %v387
    %v532 = vpop.f32.mrb[0].mxu0
    %v533 = vadd.f32 %v434, %v532
    %v534 = vpop.f32.mrb[0].mxu0
    %535 = vmatprep.mubr.f32.mxu0 0.0
    %536 = vmatmul.mubr.f32.gmra.mrb[0].mxu0 %v388
    %v537 = vpop.f32.mrb[0].mxu0
    %v538 = vadd.f32 %v434, %v537
    %v539 = vpop.f32.mrb[0].mxu0
    %540 = vmatprep.mubr.f32.mxu0 0.0
    %541 = vmatmul.mubr.f32.gmra.mrb[0].mxu0 %v389
    %v542 = vpop.f32.mrb[0].mxu0
    %v543 = vadd.f32 %v434, %v542
    %v544 = vpop.f32.mrb[0].mxu0
    %545 = vmatprep.mubr.f32.mxu0 0.0
    %546 = vmatmul.mubr.f32.gmra.mrb[0].mxu0 %v390
    %v547 = vpop.f32.mrb[0].mxu0
    %v548 = vadd.f32 %v434, %v547
    %v549 = vpop.f32.mrb[0].mxu0
    %550 = vmatprep.mubr.f32.mxu0 0.0
    %551 = vmatmul.mubr.f32.gmra.mrb[0].mxu0 %v391
    %v552 = vpop.f32.mrb[0].mxu0
    %v553 = vadd.f32 %v434, %v552
    %v554 = vpop.f32.mrb[0].mxu0
    %555 = vmatprep.mubr.f32.mxu0 0.0
    %556 = vmatmul.mubr.f32.gmra.mrb[0].mxu0 %v392
    %v557 = vpop.f32.mrb[0].mxu0
    %v558 = vadd.f32 %v434, %v557
    %v559 = vpop.f32.mrb[0].mxu0
    %560 = vmatprep.mubr.f32.mxu0 0.0
    %561 = vmatmul.mubr.f32.gmra.mrb[0].mxu0 %v393
    %v562 = vpop.f32.mrb[0].mxu0
    %v563 = vadd.f32 %v434, %v562
    %v564 = vpop.f32.mrb[0].mxu0
    %565 = vmatprep.mubr.f32.mxu0 0.0
    %566 = vmatmul.mubr.f32.gmra.mrb[0].mxu0 %v394
    %v567 = vpop.f32.mrb[0].mxu0
    %v568 = vadd.f32 %v434, %v567
    %v569 = vpop.f32.mrb[0].mxu0
    %570 = vmatprep.mubr.f32.mxu0 0.0
    %571 = vmatmul.mubr.f32.gmra.mrb[0].mxu0 %v395
    %v572 = vpop.f32.mrb[0].mxu0
    %v573 = vadd.f32 %v434, %v572
    %v574 = vpop.f32.mrb[0].mxu0
    %575 = vmatprep.mubr.f32.mxu0 0.0
    %576 = vmatmul.mubr.f32.gmra.mrb[0].mxu0 %v396
    %v577 = vpop.f32.mrb[0].mxu0
    %v578 = vadd.f32 %v434, %v577
    %v579 = vpop.f32.mrb[0].mxu0
    %580 = vmatprep.mubr.f32.mxu0 0.0
    %581 = vmatmul.mubr.f32.gmra.mrb[0].mxu0 %v397
    %v582 = vpop.f32.mrb[0].mxu0
    %v583 = vadd.f32 %v434, %v582
    %v584 = vpop.f32.mrb[0].mxu0
    %585 = vmatprep.mubr.f32.mxu0 0.0
    %586 = vmatmul.mubr.f32.gmra.mrb[0].mxu0 %v398
    %v587 = vpop.f32.mrb[0].mxu0
    %v588 = vadd.f32 %v434, %v587
    %v589 = vpop.f32.mrb[0].mxu0
    %590 = vmatprep.mubr.f32.mxu0 0.0
    %591 = vmatmul.mubr.f32.gmra.mrb[0].mxu0 %v399
    %v592 = vpop.f32.mrb[0].mxu0
    %v593 = vadd.f32 %v434, %v592
    %v594 = vpop.f32.mrb[0].mxu0
    %595 = vmatprep.mubr.f32.mxu0 0.0
    %596 = vmatmul.mubr.f32.gmra.mrb[0].mxu0 %v400
    %v597 = vpop.f32.mrb[0].mxu0
    %v598 = vadd.f32 %v434, %v597
    %v599 = vpop.f32.mrb[0].mxu0
    %600 = vmatprep.mubr.f32.mxu0 0.0
    %601 = vmatmul.mubr.f32.gmra.mrb[0].mxu0 %v401
    %v602 = vpop.f32.mrb[0].mxu0
    %v603 = vadd.f32 %v434, %v602
    %v604 = vpop.f32.mrb[0].mxu0
    %605 = vmatprep.mubr.f32.mxu0 0.0
    %606 = vmatmul.mubr.f32.gmra.mrb[0].mxu0 %v402
    %v607 = vpop.f32.mrb[0].mxu0
    %v608 = vadd.f32 %v434, %v607
    %v609 = vpop.f32.mrb[0].mxu0
    %610 = vmatprep.mubr.f32.mxu0 0.0
    %611 = vmatmul.mubr.f32.gmra.mrb[0].mxu0 %v403
    %v612 = vpop.f32.mrb[0].mxu0
    %v613 = vadd.f32 %v434, %v612
    %v614 = vpop.f32.mrb[0].mxu0
    %615 = vmatprep.mubr.f32.mxu0 0.0
    %616 = vmatmul.mubr.f32.gmra.mrb[0].mxu0 %v404
    %v617 = vpop.f32.mrb[0].mxu0
    %v618 = vadd.f32 %v434, %v617
    %v619 = vpop.f32.mrb[0].mxu0
    %620 = vmatprep.mubr.f32.mxu0 0.0
    %621 = vmatmul.mubr.f32.gmra.mrb[0].mxu0 %v405
    %v622 = vpop.f32.mrb[0].mxu0
    %v623 = vadd.f32 %v434, %v622
    %v624 = vpop.f32.mrb[0].mxu0
    %625 = vmatprep.mubr.f32.mxu0 0.0
    %626 = vmatmul.mubr.f32.gmra.mrb[0].mxu0 %v406
    %v627 = vpop.f32.mrb[0].mxu0
    %v628 = vadd.f32 %v434, %v627
    %v629 = vpop.f32.mrb[0].mxu0
    %630 = vmatprep.mubr.f32.mxu0 0.0
    %631 = vmatmul.mubr.f32.gmra.mrb[0].mxu0 %v407
    %v632 = vpop.f32.mrb[0].mxu0
    %v633 = vadd.f32 %v434, %v632
    %v634 = vpop.f32.mrb[0].mxu0
    %635 = vmatprep.mubr.f32.mxu0 0.0
    %636 = vmatmul.mubr.f32.gmra.mrb[0].mxu0 %v408
    %v637 = vpop.f32.mrb[0].mxu0
    %v638 = vadd.f32 %v434, %v637
    %v639 = vpop.f32.mrb[0].mxu0
    %640 = vmatprep.mubr.f32.mxu0 0.0
    %641 = vmatmul.mubr.f32.gmra.mrb[0].mxu0 %v409
    %v642 = vpop.f32.mrb[0].mxu0
    %v643 = vadd.f32 %v434, %v642
    %v644 = vpop.f32.mrb[0].mxu0
    %645 = vmatprep.mubr.f32.mxu0 0.0
    %646 = vmatmul.mubr.f32.gmra.mrb[0].mxu0 %v410
    %v647 = vpop.f32.mrb[0].mxu0
    %v648 = vadd.f32 %v434, %v647
    %v649 = vpop.f32.mrb[0].mxu0
    %650 = vmatprep.mubr.f32.mxu0 0.0
    %651 = vmatmul.mubr.f32.gmra.mrb[0].mxu0 %v411
    %v652 = vpop.f32.mrb[0].mxu0
    %v653 = vadd.f32 %v434, %v652
    %v654 = vpop.f32.mrb[0].mxu0
    %655 = vmatprep.mubr.f32.mxu0 0.0
    %656 = vmatmul.mubr.f32.gmra.mrb[0].mxu0 %v412
    %v657 = vpop.f32.mrb[0].mxu0
    %v658 = vadd.f32 %v434, %v657
    %v659 = vpop.f32.mrb[0].mxu0
    %660 = vdwg.mxu0
    %v661 = vmax.f32 %v503, 0.0
    %v662 = vmax.f32 %v508, 0.0
    %v663 = vmax.f32 %v513, 0.0
    %v664 = vmax.f32 %v518, 0.0
    %v665 = vmax.f32 %v523, 0.0
    %v666 = vmax.f32 %v528, 0.0
    %v667 = vmax.f32 %v533, 0.0
    %v668 = vmax.f32 %v538, 0.0
    %v669 = vmax.f32 %v543, 0.0
    %v670 = vmax.f32 %v548, 0.0
    %v671 = vmax.f32 %v553, 0.0
    %v672 = vmax.f32 %v558, 0.0
    %v673 = vmax.f32 %v563, 0.0
    %v674 = vmax.f32 %v568, 0.0
    %v675 = vmax.f32 %v573, 0.0
    %v676 = vmax.f32 %v578, 0.0
    %v677 = vmax.f32 %v583, 0.0
    %v678 = vmax.f32 %v588, 0.0
    %v679 = vmax.f32 %v593, 0.0
    %v680 = vmax.f32 %v598, 0.0
    %v681 = vmax.f32 %v603, 0.0
    %v682 = vmax.f32 %v608, 0.0
    %v683 = vmax.f32 %v613, 0.0
    %v684 = vmax.f32 %v618, 0.0
    %v685 = vmax.f32 %v623, 0.0
    %v686 = vmax.f32 %v628, 0.0
    %v687 = vmax.f32 %v633, 0.0
    %v688 = vmax.f32 %v638, 0.0
    %v689 = vmax.f32 %v643, 0.0
    %v690 = vmax.f32 %v648, 0.0
    %v691 = vmax.f32 %v653, 0.0
    %v692 = vmax.f32 %v658, 0.0
    %v693 = vld [vmem:[#allocation8] sm:$0xff]
    %v694 = vld [vmem:[#allocation8 + $0x8] sm:$0xff]
    %v695 = vld [vmem:[#allocation8 + $0x10] sm:$0xff]
    %v696 = vld [vmem:[#allocation8 + $0x18] sm:$0xff]
    %v697 = vld [vmem:[#allocation8 + $0x20] sm:$0xff]
    %v698 = vld [vmem:[#allocation8 + $0x28] sm:$0xff]
    %v699 = vld [vmem:[#allocation8 + $0x30] sm:$0xff]
    %v700 = vld [vmem:[#allocation8 + $0x38] sm:$0xff]
    %v701 = vld [vmem:[#allocation8 + $0x40] sm:$0xff]
    %v702 = vld [vmem:[#allocation8 + $0x48] sm:$0xff]
    %v703 = vld [vmem:[#allocation8 + $0x50] sm:$0xff]
    %v704 = vld [vmem:[#allocation8 + $0x58] sm:$0xff]
    %v705 = vld [vmem:[#allocation8 + $0x60] sm:$0xff]
    %v706 = vld [vmem:[#allocation8 + $0x68] sm:$0xff]
    %v707 = vld [vmem:[#allocation8 + $0x70] sm:$0xff]
    %v708 = vld [vmem:[#allocation8 + $0x78] sm:$0xff]
    %v709 = vld [vmem:[%s6] sm:$0x1]
    %v711 = vlaneseq
    %v712 = vshrl.u32 %v711, 7
    %v713 = vsub.s32 0, %v712
    %v714 = vrot.slane %v709, %v713
    %716 = vmatprep.subr.mxu0 0.0
    %717 = vmatpush1.msra.mxu0 %v693
    %718 = vmatprep.subr.mxu0 0.0
    %719 = vmatpush1.msra.mxu0 %v694
    %720 = vmatprep.subr.mxu0 0.0
    %721 = vmatpush1.msra.mxu0 %v695
    %722 = vmatprep.subr.mxu0 0.0
    %723 = vmatpush1.msra.mxu0 %v696
    %724 = vmatprep.subr.mxu0 0.0
    %725 = vmatpush1.msra.mxu0 %v697
    %726 = vmatprep.subr.mxu0 0.0
    %727 = vmatpush1.msra.mxu0 %v698
    %728 = vmatprep.subr.mxu0 0.0
    %729 = vmatpush1.msra.mxu0 %v699
    %730 = vmatprep.subr.mxu0 0.0
    %731 = vmatpush1.msra.mxu0 %v700
    %732 = vmatprep.subr.mxu0 0.0
    %733 = vmatpush1.msra.mxu0 %v701
    %734 = vmatprep.subr.mxu0 0.0
    %735 = vmatpush1.msra.mxu0 %v702
    %736 = vmatprep.subr.mxu0 0.0
    %737 = vmatpush1.msra.mxu0 %v703
    %738 = vmatprep.subr.mxu0 0.0
    %739 = vmatpush1.msra.mxu0 %v704
    %740 = vmatprep.subr.mxu0 0.0
    %741 = vmatpush1.msra.mxu0 %v705
    %742 = vmatprep.subr.mxu0 0.0
    %743 = vmatpush1.msra.mxu0 %v706
    %744 = vmatprep.subr.mxu0 0.0
    %745 = vmatpush1.msra.mxu0 %v707
    %746 = vmatprep.subr.mxu0 0.0
    %747 = vmatpush1.msra.mxu0 %v708
    %748 = vmatprep.subr.mxu0 0.0
    %749 = vmatpush1.msra.mxu0 0.0
    %750 = vmatprep.subr.mxu0 0.0
    %751 = vmatpush1.msra.mxu0 0.0
    %752 = vmatprep.subr.mxu0 0.0
    %753 = vmatpush1.msra.mxu0 0.0
    %754 = vmatprep.subr.mxu0 0.0
    %755 = vmatpush1.msra.mxu0 0.0
    %756 = vmatprep.subr.mxu0 0.0
    %757 = vmatpush1.msra.mxu0 0.0
    %758 = vmatprep.subr.mxu0 0.0
    %759 = vmatpush1.msra.mxu0 0.0
    %760 = vmatprep.subr.mxu0 0.0
    %761 = vmatpush1.msra.mxu0 0.0
    %762 = vmatprep.subr.mxu0 0.0
    %763 = vmatpush1.msra.mxu0 0.0
    %764 = vmatprep.subr.mxu0 0.0
    %765 = vmatpush1.msra.mxu0 0.0
    %766 = vmatprep.subr.mxu0 0.0
    %767 = vmatpush1.msra.mxu0 0.0
    %768 = vmatprep.subr.mxu0 0.0
    %769 = vmatpush1.msra.mxu0 0.0
    %770 = vmatprep.subr.mxu0 0.0
    %771 = vmatpush1.msra.mxu0 0.0
    %772 = vmatprep.subr.mxu0 0.0
    %773 = vmatpush1.msra.mxu0 0.0
    %774 = vmatprep.subr.mxu0 0.0
    %775 = vmatpush1.msra.mxu0 0.0
    %776 = vmatprep.subr.mxu0 0.0
    %777 = vmatpush1.msra.mxu0 0.0
    %778 = vmatprep.subr.mxu0 0.0
    %779 = vmatpush1.msra.mxu0 0.0
    %780 = vmatprep.mubr.f32.mxu0 0.0
    %781 = vmatmul.mubr.f32.gmra.mrb[0].mxu0 %v661
    %v782 = vpop.f32.mrb[0].mxu0
    %v783 = vadd.f32 %v714, %v782
    %v784 = vpop.f32.mrb[0].mxu0
    %785 = vmatprep.mubr.f32.mxu0 0.0
    %786 = vmatmul.mubr.f32.gmra.mrb[0].mxu0 %v662
    %v787 = vpop.f32.mrb[0].mxu0
    %v788 = vadd.f32 %v714, %v787
    %v789 = vpop.f32.mrb[0].mxu0
    %790 = vmatprep.mubr.f32.mxu0 0.0
    %791 = vmatmul.mubr.f32.gmra.mrb[0].mxu0 %v663
    %v792 = vpop.f32.mrb[0].mxu0
    %v793 = vadd.f32 %v714, %v792
    %v794 = vpop.f32.mrb[0].mxu0
    %795 = vmatprep.mubr.f32.mxu0 0.0
    %796 = vmatmul.mubr.f32.gmra.mrb[0].mxu0 %v664
    %v797 = vpop.f32.mrb[0].mxu0
    %v798 = vadd.f32 %v714, %v797
    %v799 = vpop.f32.mrb[0].mxu0
    %800 = vmatprep.mubr.f32.mxu0 0.0
    %801 = vmatmul.mubr.f32.gmra.mrb[0].mxu0 %v665
    %v802 = vpop.f32.mrb[0].mxu0
    %v803 = vadd.f32 %v714, %v802
    %v804 = vpop.f32.mrb[0].mxu0
    %805 = vmatprep.mubr.f32.mxu0 0.0
    %806 = vmatmul.mubr.f32.gmra.mrb[0].mxu0 %v666
    %v807 = vpop.f32.mrb[0].mxu0
    %v808 = vadd.f32 %v714, %v807
    %v809 = vpop.f32.mrb[0].mxu0
    %810 = vmatprep.mubr.f32.mxu0 0.0
    %811 = vmatmul.mubr.f32.gmra.mrb[0].mxu0 %v667
    %v812 = vpop.f32.mrb[0].mxu0
    %v813 = vadd.f32 %v714, %v812
    %v814 = vpop.f32.mrb[0].mxu0
    %815 = vmatprep.mubr.f32.mxu0 0.0
    %816 = vmatmul.mubr.f32.gmra.mrb[0].mxu0 %v668
    %v817 = vpop.f32.mrb[0].mxu0
    %v818 = vadd.f32 %v714, %v817
    %v819 = vpop.f32.mrb[0].mxu0
    %820 = vmatprep.mubr.f32.mxu0 0.0
    %821 = vmatmul.mubr.f32.gmra.mrb[0].mxu0 %v669
    %v822 = vpop.f32.mrb[0].mxu0
    %v823 = vadd.f32 %v714, %v822
    %v824 = vpop.f32.mrb[0].mxu0
    %825 = vmatprep.mubr.f32.mxu0 0.0
    %826 = vmatmul.mubr.f32.gmra.mrb[0].mxu0 %v670
    %v827 = vpop.f32.mrb[0].mxu0
    %v828 = vadd.f32 %v714, %v827
    %v829 = vpop.f32.mrb[0].mxu0
    %830 = vmatprep.mubr.f32.mxu0 0.0
    %831 = vmatmul.mubr.f32.gmra.mrb[0].mxu0 %v671
    %v832 = vpop.f32.mrb[0].mxu0
    %v833 = vadd.f32 %v714, %v832
    %v834 = vpop.f32.mrb[0].mxu0
    %835 = vmatprep.mubr.f32.mxu0 0.0
    %836 = vmatmul.mubr.f32.gmra.mrb[0].mxu0 %v672
    %v837 = vpop.f32.mrb[0].mxu0
    %v838 = vadd.f32 %v714, %v837
    %v839 = vpop.f32.mrb[0].mxu0
    %840 = vmatprep.mubr.f32.mxu0 0.0
    %841 = vmatmul.mubr.f32.gmra.mrb[0].mxu0 %v673
    %v842 = vpop.f32.mrb[0].mxu0
    %v843 = vadd.f32 %v714, %v842
    %v844 = vpop.f32.mrb[0].mxu0
    %845 = vmatprep.mubr.f32.mxu0 0.0
    %846 = vmatmul.mubr.f32.gmra.mrb[0].mxu0 %v674
    %v847 = vpop.f32.mrb[0].mxu0
    %v848 = vadd.f32 %v714, %v847
    %v849 = vpop.f32.mrb[0].mxu0
    %850 = vmatprep.mubr.f32.mxu0 0.0
    %851 = vmatmul.mubr.f32.gmra.mrb[0].mxu0 %v675
    %v852 = vpop.f32.mrb[0].mxu0
    %v853 = vadd.f32 %v714, %v852
    %v854 = vpop.f32.mrb[0].mxu0
    %855 = vmatprep.mubr.f32.mxu0 0.0
    %856 = vmatmul.mubr.f32.gmra.mrb[0].mxu0 %v676
    %v857 = vpop.f32.mrb[0].mxu0
    %v858 = vadd.f32 %v714, %v857
    %v859 = vpop.f32.mrb[0].mxu0
    %860 = vmatprep.mubr.f32.mxu0 0.0
    %861 = vmatmul.mubr.f32.gmra.mrb[0].mxu0 %v677
    %v862 = vpop.f32.mrb[0].mxu0
    %v863 = vadd.f32 %v714, %v862
    %v864 = vpop.f32.mrb[0].mxu0
    %865 = vmatprep.mubr.f32.mxu0 0.0
    %866 = vmatmul.mubr.f32.gmra.mrb[0].mxu0 %v678
    %v867 = vpop.f32.mrb[0].mxu0
    %v868 = vadd.f32 %v714, %v867
    %v869 = vpop.f32.mrb[0].mxu0
    %870 = vmatprep.mubr.f32.mxu0 0.0
    %871 = vmatmul.mubr.f32.gmra.mrb[0].mxu0 %v679
    %v872 = vpop.f32.mrb[0].mxu0
    %v873 = vadd.f32 %v714, %v872
    %v874 = vpop.f32.mrb[0].mxu0
    %875 = vmatprep.mubr.f32.mxu0 0.0
    %876 = vmatmul.mubr.f32.gmra.mrb[0].mxu0 %v680
    %v877 = vpop.f32.mrb[0].mxu0
    %v878 = vadd.f32 %v714, %v877
    %v879 = vpop.f32.mrb[0].mxu0
    %880 = vmatprep.mubr.f32.mxu0 0.0
    %881 = vmatmul.mubr.f32.gmra.mrb[0].mxu0 %v681
    %v882 = vpop.f32.mrb[0].mxu0
    %v883 = vadd.f32 %v714, %v882
    %v884 = vpop.f32.mrb[0].mxu0
    %885 = vmatprep.mubr.f32.mxu0 0.0
    %886 = vmatmul.mubr.f32.gmra.mrb[0].mxu0 %v682
    %v887 = vpop.f32.mrb[0].mxu0
    %v888 = vadd.f32 %v714, %v887
    %v889 = vpop.f32.mrb[0].mxu0
    %890 = vmatprep.mubr.f32.mxu0 0.0
    %891 = vmatmul.mubr.f32.gmra.mrb[0].mxu0 %v683
    %v892 = vpop.f32.mrb[0].mxu0
    %v893 = vadd.f32 %v714, %v892
    %v894 = vpop.f32.mrb[0].mxu0
    %895 = vmatprep.mubr.f32.mxu0 0.0
    %896 = vmatmul.mubr.f32.gmra.mrb[0].mxu0 %v684
    %v897 = vpop.f32.mrb[0].mxu0
    %v898 = vadd.f32 %v714, %v897
    %v899 = vpop.f32.mrb[0].mxu0
    %900 = vmatprep.mubr.f32.mxu0 0.0
    %901 = vmatmul.mubr.f32.gmra.mrb[0].mxu0 %v685
    %v902 = vpop.f32.mrb[0].mxu0
    %v903 = vadd.f32 %v714, %v902
    %v904 = vpop.f32.mrb[0].mxu0
    %905 = vmatprep.mubr.f32.mxu0 0.0
    %906 = vmatmul.mubr.f32.gmra.mrb[0].mxu0 %v686
    %v907 = vpop.f32.mrb[0].mxu0
    %v908 = vadd.f32 %v714, %v907
    %v909 = vpop.f32.mrb[0].mxu0
    %910 = vmatprep.mubr.f32.mxu0 0.0
    %911 = vmatmul.mubr.f32.gmra.mrb[0].mxu0 %v687
    %v912 = vpop.f32.mrb[0].mxu0
    %v913 = vadd.f32 %v714, %v912
    %v914 = vpop.f32.mrb[0].mxu0
    %915 = vmatprep.mubr.f32.mxu0 0.0
    %916 = vmatmul.mubr.f32.gmra.mrb[0].mxu0 %v688
    %v917 = vpop.f32.mrb[0].mxu0
    %v918 = vadd.f32 %v714, %v917
    %v919 = vpop.f32.mrb[0].mxu0
    %920 = vmatprep.mubr.f32.mxu0 0.0
    %921 = vmatmul.mubr.f32.gmra.mrb[0].mxu0 %v689
    %v922 = vpop.f32.mrb[0].mxu0
    %v923 = vadd.f32 %v714, %v922
    %v924 = vpop.f32.mrb[0].mxu0
    %925 = vmatprep.mubr.f32.mxu0 0.0
    %926 = vmatmul.mubr.f32.gmra.mrb[0].mxu0 %v690
    %v927 = vpop.f32.mrb[0].mxu0
    %v928 = vadd.f32 %v714, %v927
    %v929 = vpop.f32.mrb[0].mxu0
    %930 = vmatprep.mubr.f32.mxu0 0.0
    %931 = vmatmul.mubr.f32.gmra.mrb[0].mxu0 %v691
    %v932 = vpop.f32.mrb[0].mxu0
    %v933 = vadd.f32 %v714, %v932
    %v934 = vpop.f32.mrb[0].mxu0
    %935 = vmatprep.mubr.f32.mxu0 0.0
    %936 = vmatmul.mubr.f32.gmra.mrb[0].mxu0 %v692
    %v937 = vpop.f32.mrb[0].mxu0
    %v938 = vadd.f32 %v714, %v937
    %v939 = vpop.f32.mrb[0].mxu0
    %940 = vdwg.mxu0
    %v941 = vmax.f32 %v783, 0.0
    %v942 = vmax.f32 %v788, 0.0
    %v943 = vmax.f32 %v793, 0.0
    %v944 = vmax.f32 %v798, 0.0
    %v945 = vmax.f32 %v803, 0.0
    %v946 = vmax.f32 %v808, 0.0
    %v947 = vmax.f32 %v813, 0.0
    %v948 = vmax.f32 %v818, 0.0
    %v949 = vmax.f32 %v823, 0.0
    %v950 = vmax.f32 %v828, 0.0
    %v951 = vmax.f32 %v833, 0.0
    %v952 = vmax.f32 %v838, 0.0
    %v953 = vmax.f32 %v843, 0.0
    %v954 = vmax.f32 %v848, 0.0
    %v955 = vmax.f32 %v853, 0.0
    %v956 = vmax.f32 %v858, 0.0
    %v957 = vmax.f32 %v863, 0.0
    %v958 = vmax.f32 %v868, 0.0
    %v959 = vmax.f32 %v873, 0.0
    %v960 = vmax.f32 %v878, 0.0
    %v961 = vmax.f32 %v883, 0.0
    %v962 = vmax.f32 %v888, 0.0
    %v963 = vmax.f32 %v893, 0.0
    %v964 = vmax.f32 %v898, 0.0
    %v965 = vmax.f32 %v903, 0.0
    %v966 = vmax.f32 %v908, 0.0
    %v967 = vmax.f32 %v913, 0.0
    %v968 = vmax.f32 %v918, 0.0
    %v969 = vmax.f32 %v923, 0.0
    %v970 = vmax.f32 %v928, 0.0
    %v971 = vmax.f32 %v933, 0.0
    %v972 = vmax.f32 %v938, 0.0
    %v973 = vld [vmem:[#allocation10] sm:$0xff]
    %v974 = vld [vmem:[#allocation10 + $0x8] sm:$0xff]
    %v975 = vld [vmem:[#allocation10 + $0x10] sm:$0xff]
    %v976 = vld [vmem:[#allocation10 + $0x18] sm:$0xff]
    %v977 = vld [vmem:[#allocation10 + $0x20] sm:$0xff]
    %v978 = vld [vmem:[#allocation10 + $0x28] sm:$0xff]
    %v979 = vld [vmem:[#allocation10 + $0x30] sm:$0xff]
    %v980 = vld [vmem:[#allocation10 + $0x38] sm:$0xff]
    %v981 = vld [vmem:[#allocation10 + $0x40] sm:$0xff]
    %v982 = vld [vmem:[#allocation10 + $0x48] sm:$0xff]
    %v983 = vld [vmem:[#allocation10 + $0x50] sm:$0xff]
    %v984 = vld [vmem:[#allocation10 + $0x58] sm:$0xff]
    %v985 = vld [vmem:[#allocation10 + $0x60] sm:$0xff]
    %v986 = vld [vmem:[#allocation10 + $0x68] sm:$0xff]
    %v987 = vld [vmem:[#allocation10 + $0x70] sm:$0xff]
    %v988 = vld [vmem:[#allocation10 + $0x78] sm:$0xff]
    %v989 = vld [vmem:[%s8] sm:$0x1]
    %v991 = vlaneseq
    %v992 = vshrl.u32 %v991, 7
    %v993 = vsub.s32 0, %v992
    %v994 = vrot.slane %v989, %v993
    %996 = vmatprep.subr.mxu0 0.0
    %997 = vmatpush1.msra.mxu0 %v973
    %998 = vmatprep.subr.mxu0 0.0
    %999 = vmatpush1.msra.mxu0 %v974
    %1000 = vmatprep.subr.mxu0 0.0
    %1001 = vmatpush1.msra.mxu0 %v975
    %1002 = vmatprep.subr.mxu0 0.0
    %1003 = vmatpush1.msra.mxu0 %v976
    %1004 = vmatprep.subr.mxu0 0.0
    %1005 = vmatpush1.msra.mxu0 %v977
    %1006 = vmatprep.subr.mxu0 0.0
    %1007 = vmatpush1.msra.mxu0 %v978
    %1008 = vmatprep.subr.mxu0 0.0
    %1009 = vmatpush1.msra.mxu0 %v979
    %1010 = vmatprep.subr.mxu0 0.0
    %1011 = vmatpush1.msra.mxu0 %v980
    %1012 = vmatprep.subr.mxu0 0.0
    %1013 = vmatpush1.msra.mxu0 %v981
    %1014 = vmatprep.subr.mxu0 0.0
    %1015 = vmatpush1.msra.mxu0 %v982
    %1016 = vmatprep.subr.mxu0 0.0
    %1017 = vmatpush1.msra.mxu0 %v983
    %1018 = vmatprep.subr.mxu0 0.0
    %1019 = vmatpush1.msra.mxu0 %v984
    %1020 = vmatprep.subr.mxu0 0.0
    %1021 = vmatpush1.msra.mxu0 %v985
    %1022 = vmatprep.subr.mxu0 0.0
    %1023 = vmatpush1.msra.mxu0 %v986
    %1024 = vmatprep.subr.mxu0 0.0
    %1025 = vmatpush1.msra.mxu0 %v987
    %1026 = vmatprep.subr.mxu0 0.0
    %1027 = vmatpush1.msra.mxu0 %v988
    %1028 = vmatprep.subr.mxu0 0.0
    %1029 = vmatpush1.msra.mxu0 0.0
    %1030 = vmatprep.subr.mxu0 0.0
    %1031 = vmatpush1.msra.mxu0 0.0
    %1032 = vmatprep.subr.mxu0 0.0
    %1033 = vmatpush1.msra.mxu0 0.0
    %1034 = vmatprep.subr.mxu0 0.0
    %1035 = vmatpush1.msra.mxu0 0.0
    %1036 = vmatprep.subr.mxu0 0.0
    %1037 = vmatpush1.msra.mxu0 0.0
    %1038 = vmatprep.subr.mxu0 0.0
    %1039 = vmatpush1.msra.mxu0 0.0
    %1040 = vmatprep.subr.mxu0 0.0
    %1041 = vmatpush1.msra.mxu0 0.0
    %1042 = vmatprep.subr.mxu0 0.0
    %1043 = vmatpush1.msra.mxu0 0.0
    %1044 = vmatprep.subr.mxu0 0.0
    %1045 = vmatpush1.msra.mxu0 0.0
    %1046 = vmatprep.subr.mxu0 0.0
    %1047 = vmatpush1.msra.mxu0 0.0
    %1048 = vmatprep.subr.mxu0 0.0
    %1049 = vmatpush1.msra.mxu0 0.0
    %1050 = vmatprep.subr.mxu0 0.0
    %1051 = vmatpush1.msra.mxu0 0.0
    %1052 = vmatprep.subr.mxu0 0.0
    %1053 = vmatpush1.msra.mxu0 0.0
    %1054 = vmatprep.subr.mxu0 0.0
    %1055 = vmatpush1.msra.mxu0 0.0
    %1056 = vmatprep.subr.mxu0 0.0
    %1057 = vmatpush1.msra.mxu0 0.0
    %1058 = vmatprep.subr.mxu0 0.0
    %1059 = vmatpush1.msra.mxu0 0.0
    %1060 = vmatprep.mubr.f32.mxu0 0.0
    %1061 = vmatmul.mubr.f32.gmra.mrb[0].mxu0 %v941
    %v1062 = vpop.f32.mrb[0].mxu0
    %v1063 = vadd.f32 %v994, %v1062
    %v1064 = vpop.f32.mrb[0].mxu0
    %1065 = vmatprep.mubr.f32.mxu0 0.0
    %1066 = vmatmul.mubr.f32.gmra.mrb[0].mxu0 %v942
    %v1067 = vpop.f32.mrb[0].mxu0
    %v1068 = vadd.f32 %v994, %v1067
    %v1069 = vpop.f32.mrb[0].mxu0
    %1070 = vmatprep.mubr.f32.mxu0 0.0
    %1071 = vmatmul.mubr.f32.gmra.mrb[0].mxu0 %v943
    %v1072 = vpop.f32.mrb[0].mxu0
    %v1073 = vadd.f32 %v994, %v1072
    %v1074 = vpop.f32.mrb[0].mxu0
    %1075 = vmatprep.mubr.f32.mxu0 0.0
    %1076 = vmatmul.mubr.f32.gmra.mrb[0].mxu0 %v944
    %v1077 = vpop.f32.mrb[0].mxu0
    %v1078 = vadd.f32 %v994, %v1077
    %v1079 = vpop.f32.mrb[0].mxu0
    %1080 = vmatprep.mubr.f32.mxu0 0.0
    %1081 = vmatmul.mubr.f32.gmra.mrb[0].mxu0 %v945
    %v1082 = vpop.f32.mrb[0].mxu0
    %v1083 = vadd.f32 %v994, %v1082
    %v1084 = vpop.f32.mrb[0].mxu0
    %1085 = vmatprep.mubr.f32.mxu0 0.0
    %1086 = vmatmul.mubr.f32.gmra.mrb[0].mxu0 %v946
    %v1087 = vpop.f32.mrb[0].mxu0
    %v1088 = vadd.f32 %v994, %v1087
    %v1089 = vpop.f32.mrb[0].mxu0
    %1090 = vmatprep.mubr.f32.mxu0 0.0
    %1091 = vmatmul.mubr.f32.gmra.mrb[0].mxu0 %v947
    %v1092 = vpop.f32.mrb[0].mxu0
    %v1093 = vadd.f32 %v994, %v1092
    %v1094 = vpop.f32.mrb[0].mxu0
    %1095 = vmatprep.mubr.f32.mxu0 0.0
    %1096 = vmatmul.mubr.f32.gmra.mrb[0].mxu0 %v948
    %v1097 = vpop.f32.mrb[0].mxu0
    %v1098 = vadd.f32 %v994, %v1097
    %v1099 = vpop.f32.mrb[0].mxu0
    %1100 = vmatprep.mubr.f32.mxu0 0.0
    %1101 = vmatmul.mubr.f32.gmra.mrb[0].mxu0 %v949
    %v1102 = vpop.f32.mrb[0].mxu0
    %v1103 = vadd.f32 %v994, %v1102
    %v1104 = vpop.f32.mrb[0].mxu0
    %1105 = vmatprep.mubr.f32.mxu0 0.0
    %1106 = vmatmul.mubr.f32.gmra.mrb[0].mxu0 %v950
    %v1107 = vpop.f32.mrb[0].mxu0
    %v1108 = vadd.f32 %v994, %v1107
    %v1109 = vpop.f32.mrb[0].mxu0
    %1110 = vmatprep.mubr.f32.mxu0 0.0
    %1111 = vmatmul.mubr.f32.gmra.mrb[0].mxu0 %v951
    %v1112 = vpop.f32.mrb[0].mxu0
    %v1113 = vadd.f32 %v994, %v1112
    %v1114 = vpop.f32.mrb[0].mxu0
    %1115 = vmatprep.mubr.f32.mxu0 0.0
    %1116 = vmatmul.mubr.f32.gmra.mrb[0].mxu0 %v952
    %v1117 = vpop.f32.mrb[0].mxu0
    %v1118 = vadd.f32 %v994, %v1117
    %v1119 = vpop.f32.mrb[0].mxu0
    %1120 = vmatprep.mubr.f32.mxu0 0.0
    %1121 = vmatmul.mubr.f32.gmra.mrb[0].mxu0 %v953
    %v1122 = vpop.f32.mrb[0].mxu0
    %v1123 = vadd.f32 %v994, %v1122
    %v1124 = vpop.f32.mrb[0].mxu0
    %1125 = vmatprep.mubr.f32.mxu0 0.0
    %1126 = vmatmul.mubr.f32.gmra.mrb[0].mxu0 %v954
    %v1127 = vpop.f32.mrb[0].mxu0
    %v1128 = vadd.f32 %v994, %v1127
    %v1129 = vpop.f32.mrb[0].mxu0
    %1130 = vmatprep.mubr.f32.mxu0 0.0
    %1131 = vmatmul.mubr.f32.gmra.mrb[0].mxu0 %v955
    %v1132 = vpop.f32.mrb[0].mxu0
    %v1133 = vadd.f32 %v994, %v1132
    %v1134 = vpop.f32.mrb[0].mxu0
    %1135 = vmatprep.mubr.f32.mxu0 0.0
    %1136 = vmatmul.mubr.f32.gmra.mrb[0].mxu0 %v956
    %v1137 = vpop.f32.mrb[0].mxu0
    %v1138 = vadd.f32 %v994, %v1137
    %v1139 = vpop.f32.mrb[0].mxu0
    %1140 = vmatprep.mubr.f32.mxu0 0.0
    %1141 = vmatmul.mubr.f32.gmra.mrb[0].mxu0 %v957
    %v1142 = vpop.f32.mrb[0].mxu0
    %v1143 = vadd.f32 %v994, %v1142
    %v1144 = vpop.f32.mrb[0].mxu0
    %1145 = vmatprep.mubr.f32.mxu0 0.0
    %1146 = vmatmul.mubr.f32.gmra.mrb[0].mxu0 %v958
    %v1147 = vpop.f32.mrb[0].mxu0
    %v1148 = vadd.f32 %v994, %v1147
    %v1149 = vpop.f32.mrb[0].mxu0
    %1150 = vmatprep.mubr.f32.mxu0 0.0
    %1151 = vmatmul.mubr.f32.gmra.mrb[0].mxu0 %v959
    %v1152 = vpop.f32.mrb[0].mxu0
    %v1153 = vadd.f32 %v994, %v1152
    %v1154 = vpop.f32.mrb[0].mxu0
    %1155 = vmatprep.mubr.f32.mxu0 0.0
    %1156 = vmatmul.mubr.f32.gmra.mrb[0].mxu0 %v960
    %v1157 = vpop.f32.mrb[0].mxu0
    %v1158 = vadd.f32 %v994, %v1157
    %v1159 = vpop.f32.mrb[0].mxu0
    %1160 = vmatprep.mubr.f32.mxu0 0.0
    %1161 = vmatmul.mubr.f32.gmra.mrb[0].mxu0 %v961
    %v1162 = vpop.f32.mrb[0].mxu0
    %v1163 = vadd.f32 %v994, %v1162
    %v1164 = vpop.f32.mrb[0].mxu0
    %1165 = vmatprep.mubr.f32.mxu0 0.0
    %1166 = vmatmul.mubr.f32.gmra.mrb[0].mxu0 %v962
    %v1167 = vpop.f32.mrb[0].mxu0
    %v1168 = vadd.f32 %v994, %v1167
    %v1169 = vpop.f32.mrb[0].mxu0
    %1170 = vmatprep.mubr.f32.mxu0 0.0
    %1171 = vmatmul.mubr.f32.gmra.mrb[0].mxu0 %v963
    %v1172 = vpop.f32.mrb[0].mxu0
    %v1173 = vadd.f32 %v994, %v1172
    %v1174 = vpop.f32.mrb[0].mxu0
    %1175 = vmatprep.mubr.f32.mxu0 0.0
    %1176 = vmatmul.mubr.f32.gmra.mrb[0].mxu0 %v964
    %v1177 = vpop.f32.mrb[0].mxu0
    %v1178 = vadd.f32 %v994, %v1177
    %v1179 = vpop.f32.mrb[0].mxu0
    %1180 = vmatprep.mubr.f32.mxu0 0.0
    %1181 = vmatmul.mubr.f32.gmra.mrb[0].mxu0 %v965
    %v1182 = vpop.f32.mrb[0].mxu0
    %v1183 = vadd.f32 %v994, %v1182
    %v1184 = vpop.f32.mrb[0].mxu0
    %1185 = vmatprep.mubr.f32.mxu0 0.0
    %1186 = vmatmul.mubr.f32.gmra.mrb[0].mxu0 %v966
    %v1187 = vpop.f32.mrb[0].mxu0
    %v1188 = vadd.f32 %v994, %v1187
    %v1189 = vpop.f32.mrb[0].mxu0
    %1190 = vmatprep.mubr.f32.mxu0 0.0
    %1191 = vmatmul.mubr.f32.gmra.mrb[0].mxu0 %v967
    %v1192 = vpop.f32.mrb[0].mxu0
    %v1193 = vadd.f32 %v994, %v1192
    %v1194 = vpop.f32.mrb[0].mxu0
    %1195 = vmatprep.mubr.f32.mxu0 0.0
    %1196 = vmatmul.mubr.f32.gmra.mrb[0].mxu0 %v968
    %v1197 = vpop.f32.mrb[0].mxu0
    %v1198 = vadd.f32 %v994, %v1197
    %v1199 = vpop.f32.mrb[0].mxu0
    %1200 = vmatprep.mubr.f32.mxu0 0.0
    %1201 = vmatmul.mubr.f32.gmra.mrb[0].mxu0 %v969
    %v1202 = vpop.f32.mrb[0].mxu0
    %v1203 = vadd.f32 %v994, %v1202
    %v1204 = vpop.f32.mrb[0].mxu0
    %1205 = vmatprep.mubr.f32.mxu0 0.0
    %1206 = vmatmul.mubr.f32.gmra.mrb[0].mxu0 %v970
    %v1207 = vpop.f32.mrb[0].mxu0
    %v1208 = vadd.f32 %v994, %v1207
    %v1209 = vpop.f32.mrb[0].mxu0
    %1210 = vmatprep.mubr.f32.mxu0 0.0
    %1211 = vmatmul.mubr.f32.gmra.mrb[0].mxu0 %v971
    %v1212 = vpop.f32.mrb[0].mxu0
    %v1213 = vadd.f32 %v994, %v1212
    %v1214 = vpop.f32.mrb[0].mxu0
    %1215 = vmatprep.mubr.f32.mxu0 0.0
    %1216 = vmatmul.mubr.f32.gmra.mrb[0].mxu0 %v972
    %v1217 = vpop.f32.mrb[0].mxu0
    %v1218 = vadd.f32 %v994, %v1217
    %v1219 = vpop.f32.mrb[0].mxu0
    %1220 = vdwg.mxu0
    %1221 = vst [vmem:[#allocation11] sm:$0xff] %v1063
    %1222 = vst [vmem:[#allocation11 + $0x8] sm:$0xff] %v1068
    %1223 = vst [vmem:[#allocation11 + $0x10] sm:$0xff] %v1073
    %1224 = vst [vmem:[#allocation11 + $0x18] sm:$0xff] %v1078
    %1225 = vst [vmem:[#allocation11 + $0x20] sm:$0xff] %v1083
    %1226 = vst [vmem:[#allocation11 + $0x28] sm:$0xff] %v1088
    %1227 = vst [vmem:[#allocation11 + $0x30] sm:$0xff] %v1093
    %1228 = vst [vmem:[#allocation11 + $0x38] sm:$0xff] %v1098
    %1229 = vst [vmem:[#allocation11 + $0x40] sm:$0xff] %v1103
    %1230 = vst [vmem:[#allocation11 + $0x48] sm:$0xff] %v1108
    %1231 = vst [vmem:[#allocation11 + $0x50] sm:$0xff] %v1113
    %1232 = vst [vmem:[#allocation11 + $0x58] sm:$0xff] %v1118
    %1233 = vst [vmem:[#allocation11 + $0x60] sm:$0xff] %v1123
    %1234 = vst [vmem:[#allocation11 + $0x68] sm:$0xff] %v1128
    %1235 = vst [vmem:[#allocation11 + $0x70] sm:$0xff] %v1133
    %1236 = vst [vmem:[#allocation11 + $0x78] sm:$0xff] %v1138
    %1237 = vst [vmem:[#allocation11 + $0x80] sm:$0xff] %v1143
    %1238 = vst [vmem:[#allocation11 + $0x88] sm:$0xff] %v1148
    %1239 = vst [vmem:[#allocation11 + $0x90] sm:$0xff] %v1153
    %1240 = vst [vmem:[#allocation11 + $0x98] sm:$0xff] %v1158
    %1241 = vst [vmem:[#allocation11 + $0xa0] sm:$0xff] %v1163
    %1242 = vst [vmem:[#allocation11 + $0xa8] sm:$0xff] %v1168
    %1243 = vst [vmem:[#allocation11 + $0xb0] sm:$0xff] %v1173
    %1244 = vst [vmem:[#allocation11 + $0xb8] sm:$0xff] %v1178
    %1245 = vst [vmem:[#allocation11 + $0xc0] sm:$0xff] %v1183
    %1246 = vst [vmem:[#allocation11 + $0xc8] sm:$0xff] %v1188
    %1247 = vst [vmem:[#allocation11 + $0xd0] sm:$0xff] %v1193
    %1248 = vst [vmem:[#allocation11 + $0xd8] sm:$0xff] %v1198
    %1249 = vst [vmem:[#allocation11 + $0xe0] sm:$0xff] %v1203
    %1250 = vst [vmem:[#allocation11 + $0xe8] sm:$0xff] %v1208
    %1251 = vst [vmem:[#allocation11 + $0xf0] sm:$0xff] %v1213
    %1252 = vst [vmem:[#allocation11 + $0xf8] sm:$0xff] %v1218
    // Predicated region
    $region58: #{tpu_custom_call.1} parent=1 // pred_check
      _
    $region59: #{tpu_custom_call.1} parent=1 // pred_check_branch
      %1254 = sbr.rel (0) target = $region61
    $region60: #{tpu_custom_call.1} parent=1 // pred_region
      %s1256 = ssub.s32 4096, 4096
      %1257 = vsyncadd [#allocation4], %s1256
      %s1258 = sshll.u32 [#allocation11], 4
      %s1259 = int_to_ptr.vmem [resolvable:$true] %s1258
      %1264 = dma.vmem_to_hbm [thread:$0]  %s1259, 4096, %s9, [#allocation4], 128, 128, 8
    $region61: #{tpu_custom_call.1} parent=1 // pred_fallthru
      _
    // Predicated region
    $region62: #{tpu_custom_call.1} parent=1 // pred_check
      _
    $region63: #{tpu_custom_call.1} parent=1 // pred_check_branch
      %1266 = sbr.rel (0) target = $region65
    $region64: #{tpu_custom_call.1} parent=1 // pred_region
      %1267 = dma.done [#allocation4], 4096
    $region65: #{tpu_custom_call.1} parent=1 // pred_fallthru
      _
    %1268 = vsyncpa [#allocation3], 1
    %1269 = vsyncpa [#allocation6], 1
    %1270 = vsyncpa [#allocation9], 1
    %1271 = vsyncpa [#allocation4], 1

</llo_original>
